<compile_context>
chip_gen: v5e
topology: v5e:2x2
jax: 0.10.0
libtpu: 0.0.40
codegen_flags: <defaults>
</compile_context>

<pallas_src>
import math
from functools import partial

import jax
import jax.numpy as jnp
import numpy as np
from jax.experimental import pallas as pl
from jax.experimental.pallas import tpu as pltpu

# ----------------------------- model config (small, consistent with the module) ----
DIM = 64
N_HEADS = 4
N_KV_HEADS = 2
HEAD_DIM = DIM // N_HEADS            # 16
N_REP = N_HEADS // N_KV_HEADS        # 2
MULTIPLE_OF = 32
NORM_EPS = 1e-5
BATCH = 2
SEQ = 8
ROWS = BATCH * SEQ                   # 16: all query/key rows handled in one step
HALF = HEAD_DIM // 2                 # 8 rotary pairs per head
QK_W = N_HEADS * HEAD_DIM            # 64: packed q / expanded-k lane width


def _ffn_hidden(dim, multiple_of):
    hidden = 4 * dim
    hidden = int(2 * hidden / 3)
    return multiple_of * ((hidden + multiple_of - 1) // multiple_of)


FFN_HIDDEN = _ffn_hidden(DIM, MULTIPLE_OF)   # 192
FFN_PAD = 256                                # tile-aligned padded FFN width


# ----------------------------------- fused Pallas kernel ---------------------------
def block_kernel(x_ref, cos_ref, sin_ref, qmask_ref, ctxmask_ref, bias_ref,
                 wq_ref, wqr_ref, wk_ref, wkr_ref, wv_ref, wo_ref,
                 w13_ref, w2_ref, attn_nw_ref, ffn_nw_ref, o_ref, *, eps):
    x = x_ref[...]                                                   # (ROWS, DIM) f32

    # ---- RMSNorm (attention_norm) ----
    xn = x * jax.lax.rsqrt(jnp.mean(x * x, axis=-1, keepdims=True) + eps)
    xn = xn * attn_nw_ref[...]

    # ---- projections (weights pre-packed: [reals|imags] per head, GQA expanded,
    #      1/sqrt(head_dim) folded into wq; w*_rope = column-half-swapped copy) ----
    q = jnp.dot(xn, wq_ref[...], preferred_element_type=jnp.float32)    # (ROWS, 64)
    qs = jnp.dot(xn, wqr_ref[...], preferred_element_type=jnp.float32)  # partner of q
    k = jnp.dot(xn, wk_ref[...], preferred_element_type=jnp.float32)    # (ROWS, 64)
    ks = jnp.dot(xn, wkr_ref[...], preferred_element_type=jnp.float32)  # partner of k
    v = jnp.dot(xn, wv_ref[...], preferred_element_type=jnp.float32)    # (ROWS, 64)

    # ---- RoPE: full-width FMAs against sign-folded [cos|cos] / [-sin|+sin] tables ----
    cos = cos_ref[...]
    sin = sin_ref[...]
    q_rot = q * cos + qs * sin                                       # (ROWS, 64)
    k_rot = k * cos + ks * sin                                       # (ROWS, 64)

    # ---- all-head scores in ONE matmul: rows = (head, query-row) --------------------
    # Qbd stacks q_rot once per head along sublanes and keeps only that head's lanes.
    q_bd = jnp.concatenate([q_rot] * N_HEADS, axis=0) * qmask_ref[...]   # (4*ROWS, 64)
    scores = jax.lax.dot_general(q_bd, k_rot, (((1,), (1,)), ((), ())),
                                 preferred_element_type=jnp.float32)     # (4*ROWS, ROWS)
    scores = scores + bias_ref[...]      # block-diagonal (per-batch) causal bias

    # ---- softmax (standard last-dim reductions, one row per (head, query)) ----------
    m = jnp.max(scores, axis=-1, keepdims=True)
    p = jnp.exp(scores - m)
    p = p * pl.reciprocal(jnp.sum(p, axis=-1, keepdims=True), approx=False)

    # ---- all-head context in ONE matmul; fold head blocks back to (ROWS, DIM) -------
    ctx_bd = jnp.dot(p, v, preferred_element_type=jnp.float32) * ctxmask_ref[...]
    ctx = ctx_bd[0:ROWS]
    for h in range(1, N_HEADS):
        ctx = ctx + ctx_bd[h * ROWS:(h + 1) * ROWS]                  # (ROWS, DIM)

    # ---- output projection + residual ----
    h1 = x + jnp.dot(ctx, wo_ref[...], preferred_element_type=jnp.float32)

    # ---- RMSNorm (ffn_norm) ----
    hn = h1 * jax.lax.rsqrt(jnp.mean(h1 * h1, axis=-1, keepdims=True) + eps)
    hn = hn * ffn_nw_ref[...]

    # ---- SwiGLU FFN (w1|w3 padded to 256 -> tile-aligned split) + residual ----------
    h13 = jnp.dot(hn, w13_ref[...], preferred_element_type=jnp.float32)  # (ROWS, 512)
    g1 = h13[:, :FFN_PAD]
    g3 = h13[:, FFN_PAD:]
    gated = g1 * jax.nn.sigmoid(g1) * g3                             # SiLU(w1 x)*(w3 x)
    o_ref[...] = h1 + jnp.dot(gated, w2_ref[...], preferred_element_type=jnp.float32)


# ----------------------------------- one-time weight / table packing ----------------
def prepare_params(params, freqs_cos, freqs_sin):
    """Fold RoPE layout, GQA expansion, score scale, FFN padding and all constant
    masks/tables into host-side prepared arrays the kernel consumes directly."""
    wq = np.asarray(params["wq"], np.float32)    # (DIM, 64)
    wk = np.asarray(params["wk"], np.float32)    # (DIM, 32)
    wv = np.asarray(params["wv"], np.float32)    # (DIM, 32)
    scale = 1.0 / math.sqrt(HEAD_DIM)

    # Packed layouts (64 lanes): q/k = [reals h0..h3 | imags h0..h3], 8 lanes per head;
    # k and v are expanded to one block per *query* head (repeat_kv folded into prep).
    wq_p = np.zeros((DIM, QK_W), np.float32)
    wk_p = np.zeros((DIM, QK_W), np.float32)
    wv_p = np.zeros((DIM, QK_W), np.float32)
    for h in range(N_HEADS):
        g = h // N_REP
        for r in range(HALF):
            wq_p[:, HALF * h + r] = wq[:, HEAD_DIM * h + 2 * r] * scale
            wq_p[:, QK_W // 2 + HALF * h + r] = wq[:, HEAD_DIM * h + 2 * r + 1] * scale
            wk_p[:, HALF * h + r] = wk[:, HEAD_DIM * g + 2 * r]
            wk_p[:, QK_W // 2 + HALF * h + r] = wk[:, HEAD_DIM * g + 2 * r + 1]
        wv_p[:, HEAD_DIM * h:HEAD_DIM * (h + 1)] = wv[:, HEAD_DIM * g:HEAD_DIM * (g + 1)]

    # "Partner" projections for RoPE: column halves swapped (imag|real) so the
    # kernel never has to shuffle lanes.
    wq_rope = np.concatenate([wq_p[:, QK_W // 2:], wq_p[:, :QK_W // 2]], axis=1)
    wk_rope = np.concatenate([wk_p[:, QK_W // 2:], wk_p[:, :QK_W // 2]], axis=1)

    # RoPE tables with the rotation sign folded in: x_rot = x*cos + partner*sin.
    cos8 = np.asarray(freqs_cos, np.float32)     # (SEQ, HALF)
    sin8 = np.asarray(freqs_sin, np.float32)
    cos_row = np.tile(cos8, (1, 2 * N_HEADS))                            # (SEQ, 64)
    sin_row = np.concatenate([-np.tile(sin8, (1, N_HEADS)),
                              np.tile(sin8, (1, N_HEADS))], axis=1)      # (SEQ, 64)
    cos_tab = np.tile(cos_row, (BATCH, 1))                               # (ROWS, 64)
    sin_tab = np.tile(sin_row, (BATCH, 1))

    # Block-diagonal head masks for the batched-heads attention matmuls.
    qmask = np.zeros((N_HEADS * ROWS, QK_W), np.float32)
    ctxmask = np.zeros((N_HEADS * ROWS, QK_W), np.float32)
    for h in range(N_HEADS):
        r0, r1 = h * ROWS, (h + 1) * ROWS
        qmask[r0:r1, HALF * h:HALF * (h + 1)] = 1.0
        qmask[r0:r1, QK_W // 2 + HALF * h:QK_W // 2 + HALF * (h + 1)] = 1.0
        ctxmask[r0:r1, HEAD_DIM * h:HEAD_DIM * (h + 1)] = 1.0

    # Additive causal bias, block-diagonal over the folded batches.
    bias1 = np.full((ROWS, ROWS), -1e9, np.float32)
    for i in range(ROWS):
        for j in range(ROWS):
            if (i // SEQ == j // SEQ) and (j % SEQ <= i % SEQ):
                bias1[i, j] = 0.0
    bias = np.tile(bias1, (N_HEADS, 1))                                  # (4*ROWS, ROWS)

    # FFN: pad w1/w3 to 256 columns and w2 to 256 rows -> tile-aligned split.
    w1 = np.asarray(params["w1"], np.float32)
    w3 = np.asarray(params["w3"], np.float32)
    w2 = np.asarray(params["w2"], np.float32)
    w13 = np.zeros((DIM, 2 * FFN_PAD), np.float32)
    w13[:, :FFN_HIDDEN] = w1
    w13[:, FFN_PAD:FFN_PAD + FFN_HIDDEN] = w3
    w2p = np.zeros((FFN_PAD, DIM), np.float32)
    w2p[:FFN_HIDDEN, :] = w2

    f = lambda a: jnp.asarray(a, jnp.float32)
    return {
        "cos": f(cos_tab), "sin": f(sin_tab),
        "qmask": f(qmask), "ctxmask": f(ctxmask), "bias": f(bias),
        "wq": f(wq_p), "wq_rope": f(wq_rope),
        "wk": f(wk_p), "wk_rope": f(wk_rope),
        "wv": f(wv_p),
        "wo": f(params["wo"]),
        "w13": f(w13), "w2": f(w2p),
        "attn_norm_w": f(params["attn_norm_w"]).reshape(1, DIM),
        "ffn_norm_w": f(params["ffn_norm_w"]).reshape(1, DIM),
    }


# ----------------------------------- wrapper ----------------------------------------
def transformer_block(x, pp):
    B, S, D = x.shape
    x2d = x.reshape(B * S, D).astype(jnp.float32)
    vmem = pl.BlockSpec(memory_space=pltpu.MemorySpace.VMEM)     # whole array in VMEM

    out2d = pl.pallas_call(
        partial(block_kernel, eps=NORM_EPS),
        out_shape=jax.ShapeDtypeStruct((B * S, D), jnp.float32),
        in_specs=[vmem] * 16,
        out_specs=vmem,
    )(x2d, pp["cos"], pp["sin"], pp["qmask"], pp["ctxmask"], pp["bias"],
      pp["wq"], pp["wq_rope"], pp["wk"], pp["wk_rope"], pp["wv"], pp["wo"],
      pp["w13"], pp["w2"], pp["attn_norm_w"], pp["ffn_norm_w"])

    return out2d.reshape(B, S, D)


# ----------------------------------- reference (pure JAX, original params) ----------
def apply_rotary_emb(xq, xk, cos, sin):
    def rot(t):
        tr = t.reshape(t.shape[:-1] + (t.shape[-1] // 2, 2))
        t_r, t_i = tr[..., 0], tr[..., 1]
        c = cos[None, :, None, :]
        s = sin[None, :, None, :]
        o_r = t_r * c - t_i * s
        o_i = t_r * s + t_i * c
        return jnp.stack([o_r, o_i], axis=-1).reshape(t.shape)
    return rot(xq), rot(xk)


def repeat_kv(x, n_rep):
    b, s, kvh, d = x.shape
    if n_rep == 1:
        return x
    return jnp.broadcast_to(
        x[:, :, :, None, :], (b, s, kvh, n_rep, d)).reshape(b, s, kvh * n_rep, d)


def reference_block(x, freqs_cos, freqs_sin, params):
    def rms(v, w):
        return v * jax.lax.rsqrt(jnp.mean(v * v, -1, keepdims=True) + NORM_EPS) * w

    B, S, D = x.shape
    xn = rms(x, params["attn_norm_w"])
    xq = (xn @ params["wq"]).reshape(B, S, N_HEADS, HEAD_DIM)
    xk = (xn @ params["wk"]).reshape(B, S, N_KV_HEADS, HEAD_DIM)
    xv = (xn @ params["wv"]).reshape(B, S, N_KV_HEADS, HEAD_DIM)
    xq, xk = apply_rotary_emb(xq, xk, freqs_cos, freqs_sin)
    xk = repeat_kv(xk, N_REP)
    xv = repeat_kv(xv, N_REP)
    q = xq.transpose(0, 2, 1, 3)
    k = xk.transpose(0, 2, 1, 3)
    v = xv.transpose(0, 2, 1, 3)
    scores = jnp.einsum("bhqd,bhkd->bhqk", q, k) / math.sqrt(HEAD_DIM)
    mask = jnp.triu(jnp.full((S, S), -jnp.inf), k=1)
    scores = scores + mask[None, None]
    p = jax.nn.softmax(scores, axis=-1)
    ctx = jnp.einsum("bhqk,bhkd->bhqd", p, v)
    ctx = ctx.transpose(0, 2, 1, 3).reshape(B, S, D)
    h = x + ctx @ params["wo"]
    hn = rms(h, params["ffn_norm_w"])
    g = jax.nn.silu(hn @ params["w1"]) * (hn @ params["w3"])
    return h + g @ params["w2"]


# ----------------------------------- main --------------------------------------------
def init_params(key):
    def linear(k, fan_in, fan_out):
        bound = 1.0 / math.sqrt(fan_in)
        # stored as (in, out) == transpose of torch's (out, in)
        return jax.random.uniform(k, (fan_in, fan_out), jnp.float32, -bound, bound)

    ks = jax.random.split(key, 8)
    return {
        "wq": linear(ks[0], DIM, N_HEADS * HEAD_DIM),
        "wk": linear(ks[1], DIM, N_KV_HEADS * HEAD_DIM),
        "wv": linear(ks[2], DIM, N_KV_HEADS * HEAD_DIM),
        "wo": linear(ks[3], N_HEADS * HEAD_DIM, DIM),
        "w1": linear(ks[4], DIM, FFN_HIDDEN),
        "w3": linear(ks[5], DIM, FFN_HIDDEN),
        "w2": linear(ks[6], FFN_HIDDEN, DIM),
        "attn_norm_w": jnp.ones((DIM,), jnp.float32),
        "ffn_norm_w": jnp.ones((DIM,), jnp.float32),
    }


if __name__ == "__main__":
    key = jax.random.PRNGKey(0)
    k_x, k_p = jax.random.split(key)
    x = jax.random.normal(k_x, (BATCH, SEQ, DIM), jnp.float32)
    params = init_params(k_p)

    # precomputed RoPE tables, shape (seq, head_dim // 2)
    inv_freq = 1.0 / (10000.0 ** (jnp.arange(0, HEAD_DIM, 2, dtype=jnp.float32) / HEAD_DIM))
    t = jnp.arange(SEQ, dtype=jnp.float32)
    freqs = jnp.outer(t, inv_freq)
    freqs_cos = jnp.cos(freqs)
    freqs_sin = jnp.sin(freqs)

    pparams = prepare_params(params, freqs_cos, freqs_sin)   # one-time packing

    out = jax.jit(transformer_block)(x, pparams)
    out = jax.block_until_ready(out)

    ref = reference_block(x, freqs_cos, freqs_sin, params)
    np.testing.assert_allclose(np.asarray(out), np.asarray(ref), rtol=1e-3, atol=1e-3)

    print("KERNEL_OK")
</pallas_src>

<mosaic_0001>
module attributes {stable_mosaic.version = 11 : i64} {
  func.func @block_kernel(%arg0: memref<16x64xf32, #tpu.memory_space<vmem>>, %arg1: memref<16x64xf32, #tpu.memory_space<vmem>>, %arg2: memref<16x64xf32, #tpu.memory_space<vmem>>, %arg3: memref<64x64xf32, #tpu.memory_space<vmem>>, %arg4: memref<64x64xf32, #tpu.memory_space<vmem>>, %arg5: memref<64x16xf32, #tpu.memory_space<vmem>>, %arg6: memref<64x64xf32, #tpu.memory_space<vmem>>, %arg7: memref<64x64xf32, #tpu.memory_space<vmem>>, %arg8: memref<64x64xf32, #tpu.memory_space<vmem>>, %arg9: memref<64x64xf32, #tpu.memory_space<vmem>>, %arg10: memref<64x64xf32, #tpu.memory_space<vmem>>, %arg11: memref<64x64xf32, #tpu.memory_space<vmem>>, %arg12: memref<64x512xf32, #tpu.memory_space<vmem>>, %arg13: memref<256x64xf32, #tpu.memory_space<vmem>>, %arg14: memref<1x64xf32, #tpu.memory_space<vmem>>, %arg15: memref<1x64xf32, #tpu.memory_space<vmem>>, %arg16: memref<16x64xf32, #tpu.memory_space<vmem>>) attributes {dimension_semantics = [], scalar_prefetch = 0 : i64, scratch_operands = 0 : i64, tpu.core_type = #tpu.core_type<tc>} {
    %c0 = arith.constant 0 : index
    %c0_0 = arith.constant 0 : index
    %0 = vector.load %arg0[%c0, %c0_0] : memref<16x64xf32, #tpu.memory_space<vmem>>, vector<16x64xf32>
    %1 = arith.mulf %0, %0 : vector<16x64xf32>
    %cst = arith.constant dense<0.000000e+00> : vector<16xf32>
    %2 = vector.multi_reduction <add>, %1, %cst [1] : vector<16x64xf32> to vector<16xf32>
    %3 = vector.shape_cast %2 : vector<16xf32> to vector<16x1xf32>
    %cst_1 = arith.constant 6.400000e+01 : f32
    %4 = vector.broadcast %cst_1 : f32 to vector<16x1xf32>
    %5 = arith.divf %3, %4 : vector<16x1xf32>
    %cst_2 = arith.constant 9.99999974E-6 : f32
    %6 = vector.broadcast %cst_2 : f32 to vector<16x1xf32>
    %7 = arith.addf %5, %6 : vector<16x1xf32>
    %8 = math.rsqrt %7 : vector<16x1xf32>
    %9 = vector.broadcast %8 : vector<16x1xf32> to vector<16x64xf32>
    %10 = arith.mulf %0, %9 : vector<16x64xf32>
    %c0_3 = arith.constant 0 : index
    %c0_4 = arith.constant 0 : index
    %11 = vector.load %arg14[%c0_3, %c0_4] : memref<1x64xf32, #tpu.memory_space<vmem>>, vector<1x64xf32>
    %12 = vector.broadcast %11 : vector<1x64xf32> to vector<16x64xf32>
    %13 = arith.mulf %10, %12 : vector<16x64xf32>
    %c0_5 = arith.constant 0 : index
    %c0_6 = arith.constant 0 : index
    %14 = vector.load %arg6[%c0_5, %c0_6] : memref<64x64xf32, #tpu.memory_space<vmem>>, vector<64x64xf32>
    %cst_7 = arith.constant dense<0.000000e+00> : vector<16x64xf32>
    %15 = tpu.matmul %13, %14, %cst_7 {dimension_numbers = #tpu.dot_dimension_numbers<[1], [0], [0], [1], [0, 0, 1, 1], [], []>} : vector<16x64xf32>, vector<64x64xf32>, vector<16x64xf32> -> vector<16x64xf32>
    %c0_8 = arith.constant 0 : index
    %c0_9 = arith.constant 0 : index
    %16 = vector.load %arg7[%c0_8, %c0_9] : memref<64x64xf32, #tpu.memory_space<vmem>>, vector<64x64xf32>
    %cst_10 = arith.constant dense<0.000000e+00> : vector<16x64xf32>
    %17 = tpu.matmul %13, %16, %cst_10 {dimension_numbers = #tpu.dot_dimension_numbers<[1], [0], [0], [1], [0, 0, 1, 1], [], []>} : vector<16x64xf32>, vector<64x64xf32>, vector<16x64xf32> -> vector<16x64xf32>
    %c0_11 = arith.constant 0 : index
    %c0_12 = arith.constant 0 : index
    %18 = vector.load %arg8[%c0_11, %c0_12] : memref<64x64xf32, #tpu.memory_space<vmem>>, vector<64x64xf32>
    %cst_13 = arith.constant dense<0.000000e+00> : vector<16x64xf32>
    %19 = tpu.matmul %13, %18, %cst_13 {dimension_numbers = #tpu.dot_dimension_numbers<[1], [0], [0], [1], [0, 0, 1, 1], [], []>} : vector<16x64xf32>, vector<64x64xf32>, vector<16x64xf32> -> vector<16x64xf32>
    %c0_14 = arith.constant 0 : index
    %c0_15 = arith.constant 0 : index
    %20 = vector.load %arg9[%c0_14, %c0_15] : memref<64x64xf32, #tpu.memory_space<vmem>>, vector<64x64xf32>
    %cst_16 = arith.constant dense<0.000000e+00> : vector<16x64xf32>
    %21 = tpu.matmul %13, %20, %cst_16 {dimension_numbers = #tpu.dot_dimension_numbers<[1], [0], [0], [1], [0, 0, 1, 1], [], []>} : vector<16x64xf32>, vector<64x64xf32>, vector<16x64xf32> -> vector<16x64xf32>
    %c0_17 = arith.constant 0 : index
    %c0_18 = arith.constant 0 : index
    %22 = vector.load %arg10[%c0_17, %c0_18] : memref<64x64xf32, #tpu.memory_space<vmem>>, vector<64x64xf32>
    %cst_19 = arith.constant dense<0.000000e+00> : vector<16x64xf32>
    %23 = tpu.matmul %13, %22, %cst_19 {dimension_numbers = #tpu.dot_dimension_numbers<[1], [0], [0], [1], [0, 0, 1, 1], [], []>} : vector<16x64xf32>, vector<64x64xf32>, vector<16x64xf32> -> vector<16x64xf32>
    %c0_20 = arith.constant 0 : index
    %c0_21 = arith.constant 0 : index
    %24 = vector.load %arg1[%c0_20, %c0_21] : memref<16x64xf32, #tpu.memory_space<vmem>>, vector<16x64xf32>
    %c0_22 = arith.constant 0 : index
    %c0_23 = arith.constant 0 : index
    %25 = vector.load %arg2[%c0_22, %c0_23] : memref<16x64xf32, #tpu.memory_space<vmem>>, vector<16x64xf32>
    %26 = arith.mulf %15, %24 : vector<16x64xf32>
    %27 = arith.mulf %17, %25 : vector<16x64xf32>
    %28 = arith.addf %26, %27 : vector<16x64xf32>
    %29 = arith.mulf %19, %24 : vector<16x64xf32>
    %30 = arith.mulf %21, %25 : vector<16x64xf32>
    %31 = arith.addf %29, %30 : vector<16x64xf32>
    %32 = tpu.concatenate %28, %28, %28, %28 in 0 : vector<16x64xf32>, vector<16x64xf32>, vector<16x64xf32>, vector<16x64xf32> -> vector<64x64xf32>
    %c0_24 = arith.constant 0 : index
    %c0_25 = arith.constant 0 : index
    %33 = vector.load %arg3[%c0_24, %c0_25] : memref<64x64xf32, #tpu.memory_space<vmem>>, vector<64x64xf32>
    %34 = arith.mulf %32, %33 : vector<64x64xf32>
    %cst_26 = arith.constant dense<0.000000e+00> : vector<64x16xf32>
    %35 = tpu.matmul %34, %31, %cst_26 {dimension_numbers = #tpu.dot_dimension_numbers<[1], [1], [0], [0], [0, 0, 1, 0], [], []>} : vector<64x64xf32>, vector<16x64xf32>, vector<64x16xf32> -> vector<64x16xf32>
    %c0_27 = arith.constant 0 : index
    %c0_28 = arith.constant 0 : index
    %36 = vector.load %arg5[%c0_27, %c0_28] : memref<64x16xf32, #tpu.memory_space<vmem>>, vector<64x16xf32>
    %37 = arith.addf %35, %36 : vector<64x16xf32>
    %cst_29 = arith.constant dense<0xFF800000> : vector<64xf32>
    %38 = vector.multi_reduction <maximumf>, %37, %cst_29 [1] : vector<64x16xf32> to vector<64xf32>
    %39 = vector.shape_cast %38 : vector<64xf32> to vector<64x1xf32>
    %40 = vector.broadcast %39 : vector<64x1xf32> to vector<64x16xf32>
    %41 = arith.subf %37, %40 : vector<64x16xf32>
    %42 = math.exp %41 : vector<64x16xf32>
    %cst_30 = arith.constant dense<0.000000e+00> : vector<64xf32>
    %43 = vector.multi_reduction <add>, %42, %cst_30 [1] : vector<64x16xf32> to vector<64xf32>
    %44 = vector.shape_cast %43 : vector<64xf32> to vector<64x1xf32>
    %45 = tpu.reciprocal %44 : vector<64x1xf32> -> vector<64x1xf32>
    %46 = vector.broadcast %45 : vector<64x1xf32> to vector<64x16xf32>
    %47 = arith.mulf %42, %46 : vector<64x16xf32>
    %cst_31 = arith.constant dense<0.000000e+00> : vector<64x64xf32>
    %48 = tpu.matmul %47, %23, %cst_31 {dimension_numbers = #tpu.dot_dimension_numbers<[1], [0], [0], [1], [0, 0, 1, 1], [], []>} : vector<64x16xf32>, vector<16x64xf32>, vector<64x64xf32> -> vector<64x64xf32>
    %c0_32 = arith.constant 0 : index
    %c0_33 = arith.constant 0 : index
    %49 = vector.load %arg4[%c0_32, %c0_33] : memref<64x64xf32, #tpu.memory_space<vmem>>, vector<64x64xf32>
    %50 = arith.mulf %48, %49 : vector<64x64xf32>
    %51 = vector.extract_strided_slice %50 {offsets = [0, 0], sizes = [16, 64], strides = [1, 1]} : vector<64x64xf32> to vector<16x64xf32>
    %52 = vector.extract_strided_slice %50 {offsets = [16, 0], sizes = [16, 64], strides = [1, 1]} : vector<64x64xf32> to vector<16x64xf32>
    %53 = arith.addf %51, %52 : vector<16x64xf32>
    %54 = vector.extract_strided_slice %50 {offsets = [32, 0], sizes = [16, 64], strides = [1, 1]} : vector<64x64xf32> to vector<16x64xf32>
    %55 = arith.addf %53, %54 : vector<16x64xf32>
    %56 = vector.extract_strided_slice %50 {offsets = [48, 0], sizes = [16, 64], strides = [1, 1]} : vector<64x64xf32> to vector<16x64xf32>
    %57 = arith.addf %55, %56 : vector<16x64xf32>
    %c0_34 = arith.constant 0 : index
    %c0_35 = arith.constant 0 : index
    %58 = vector.load %arg11[%c0_34, %c0_35] : memref<64x64xf32, #tpu.memory_space<vmem>>, vector<64x64xf32>
    %cst_36 = arith.constant dense<0.000000e+00> : vector<16x64xf32>
    %59 = tpu.matmul %57, %58, %cst_36 {dimension_numbers = #tpu.dot_dimension_numbers<[1], [0], [0], [1], [0, 0, 1, 1], [], []>} : vector<16x64xf32>, vector<64x64xf32>, vector<16x64xf32> -> vector<16x64xf32>
    %60 = arith.addf %0, %59 : vector<16x64xf32>
    %61 = arith.mulf %60, %60 : vector<16x64xf32>
    %cst_37 = arith.constant dense<0.000000e+00> : vector<16xf32>
    %62 = vector.multi_reduction <add>, %61, %cst_37 [1] : vector<16x64xf32> to vector<16xf32>
    %63 = vector.shape_cast %62 : vector<16xf32> to vector<16x1xf32>
    %cst_38 = arith.constant 6.400000e+01 : f32
    %64 = vector.broadcast %cst_38 : f32 to vector<16x1xf32>
    %65 = arith.divf %63, %64 : vector<16x1xf32>
    %cst_39 = arith.constant 9.99999974E-6 : f32
    %66 = vector.broadcast %cst_39 : f32 to vector<16x1xf32>
    %67 = arith.addf %65, %66 : vector<16x1xf32>
    %68 = math.rsqrt %67 : vector<16x1xf32>
    %69 = vector.broadcast %68 : vector<16x1xf32> to vector<16x64xf32>
    %70 = arith.mulf %60, %69 : vector<16x64xf32>
    %c0_40 = arith.constant 0 : index
    %c0_41 = arith.constant 0 : index
    %71 = vector.load %arg15[%c0_40, %c0_41] : memref<1x64xf32, #tpu.memory_space<vmem>>, vector<1x64xf32>
    %72 = vector.broadcast %71 : vector<1x64xf32> to vector<16x64xf32>
    %73 = arith.mulf %70, %72 : vector<16x64xf32>
    %c0_42 = arith.constant 0 : index
    %c0_43 = arith.constant 0 : index
    %74 = vector.load %arg12[%c0_42, %c0_43] : memref<64x512xf32, #tpu.memory_space<vmem>>, vector<64x512xf32>
    %cst_44 = arith.constant dense<0.000000e+00> : vector<16x512xf32>
    %75 = tpu.matmul %73, %74, %cst_44 {dimension_numbers = #tpu.dot_dimension_numbers<[1], [0], [0], [1], [0, 0, 1, 1], [], []>} : vector<16x64xf32>, vector<64x512xf32>, vector<16x512xf32> -> vector<16x512xf32>
    %76 = vector.extract_strided_slice %75 {offsets = [0, 0], sizes = [16, 256], strides = [1, 1]} : vector<16x512xf32> to vector<16x256xf32>
    %77 = vector.extract_strided_slice %75 {offsets = [0, 256], sizes = [16, 256], strides = [1, 1]} : vector<16x512xf32> to vector<16x256xf32>
    %78 = arith.negf %76 : vector<16x256xf32>
    %79 = math.exp %78 : vector<16x256xf32>
    %cst_45 = arith.constant 1.000000e+00 : f32
    %80 = vector.broadcast %cst_45 : f32 to vector<16x256xf32>
    %81 = arith.addf %80, %79 : vector<16x256xf32>
    %82 = arith.divf %80, %81 : vector<16x256xf32>
    %83 = arith.mulf %76, %82 : vector<16x256xf32>
    %84 = arith.mulf %83, %77 : vector<16x256xf32>
    %c0_46 = arith.constant 0 : index
    %c0_47 = arith.constant 0 : index
    %85 = vector.load %arg13[%c0_46, %c0_47] : memref<256x64xf32, #tpu.memory_space<vmem>>, vector<256x64xf32>
    %cst_48 = arith.constant dense<0.000000e+00> : vector<16x64xf32>
    %86 = tpu.matmul %84, %85, %cst_48 {dimension_numbers = #tpu.dot_dimension_numbers<[1], [0], [0], [1], [0, 0, 1, 1], [], []>} : vector<16x256xf32>, vector<256x64xf32>, vector<16x64xf32> -> vector<16x64xf32>
    %87 = arith.addf %60, %86 : vector<16x64xf32>
    %c0_49 = arith.constant 0 : index
    %c0_50 = arith.constant 0 : index
    %88 = vector.load %arg16[%c0_49, %c0_50] : memref<16x64xf32, #tpu.memory_space<vmem>>, vector<16x64xf32>
    tpu.vector_store %arg16[%c0_49, %c0_50], %87 {strides = array<i32>} : memref<16x64xf32, #tpu.memory_space<vmem>>, vector<16x64xf32>,
    return
  }
}

</mosaic_0001>

<llo_original>
// kernel: transformer_block.1
$region0: #{transformer_block.1}
  #allocation0 [shape = 'u32[]', space=smem, size = 0x4, offset = 0x4, fixed_abs, tag = 'smem constant byte address 0x4 - core index']
  #allocation1 [shape = 'u32[72,128]{1,0:T(1,128)}', space=vmem, size = 0x9000, scoped, tag = 'internal scratch']
  %s0 = inlined_call_operand.vmem [shape: f32[16,64], index: 0, kind: input, shape index: {}]
  %s1 = inlined_call_operand.hbm [shape: f32[16,64], index: 1, kind: input, shape index: {}]
  %s2 = inlined_call_operand.hbm [shape: f32[16,64], index: 2, kind: input, shape index: {}]
  %s3 = inlined_call_operand.vmem [shape: f32[64,64], index: 3, kind: input, shape index: {}]
  %s4 = inlined_call_operand.vmem [shape: f32[64,64], index: 4, kind: input, shape index: {}]
  %s5 = inlined_call_operand.vmem [shape: f32[64,16], index: 5, kind: input, shape index: {}]
  %s6 = inlined_call_operand.vmem [shape: f32[64,64], index: 6, kind: input, shape index: {}]
  %s7 = inlined_call_operand.hbm [shape: f32[64,64], index: 7, kind: input, shape index: {}]
  %s8 = inlined_call_operand.hbm [shape: f32[64,64], index: 8, kind: input, shape index: {}]
  %s9 = inlined_call_operand.hbm [shape: f32[64,64], index: 9, kind: input, shape index: {}]
  %s10 = inlined_call_operand.hbm [shape: f32[64,64], index: 10, kind: input, shape index: {}]
  %s11 = inlined_call_operand.hbm [shape: f32[64,64], index: 11, kind: input, shape index: {}]
  %s12 = inlined_call_operand.vmem [shape: f32[64,512], index: 12, kind: input, shape index: {}]
  %s13 = inlined_call_operand.vmem [shape: f32[256,64], index: 13, kind: input, shape index: {}]
  %s14 = inlined_call_operand.vmem [shape: f32[1,64], index: 14, kind: input, shape index: {}]
  %s15 = inlined_call_operand.vmem [shape: f32[1,64], index: 15, kind: input, shape index: {}]
  %s16 = inlined_call_operand.hbm [shape: f32[16,64], index: 16, kind: output, shape index: {}]
  %s17 = sld [smem:[#allocation0]]
  $region102: #{transformer_block.1} parent=0
    _
  %s19 = ssub.s32 1, %s17
  %s20 = scalar_select 0, %s19, %s17
  $region1: #{transformer_block.1} parent=0
    #allocation2 [shape = 'u8[8192]{0}', space=vmem, size = 0x2000, scoped, tag = 'input window, operand 1, single buffered']
    #allocation3 [shape = 's32[1]{0}', space=sflag, size = 0x4, scoped, tag = 'scoped memory for transformer_block.1']
    #allocation4 [shape = 's32[1]{0}', space=sflag, size = 0x4, scoped, tag = 'scoped memory for transformer_block.1']
    #allocation5 [shape = 'u8[8192]{0}', space=vmem, size = 0x2000, scoped, tag = 'input window, operand 2, single buffered']
    #allocation6 [shape = 's32[1]{0}', space=sflag, size = 0x4, scoped, tag = 'scoped memory for transformer_block.1']
    #allocation7 [shape = 'u8[32768]{0}', space=vmem, size = 0x8000, scoped, tag = 'input window, operand 7, single buffered']
    #allocation8 [shape = 'u8[32768]{0}', space=vmem, size = 0x8000, scoped, tag = 'input window, operand 8, single buffered']
    #allocation9 [shape = 's32[1]{0}', space=sflag, size = 0x4, scoped, tag = 'scoped memory for transformer_block.1']
    #allocation10 [shape = 'u8[32768]{0}', space=vmem, size = 0x8000, scoped, tag = 'input window, operand 9, single buffered']
    #allocation11 [shape = 'u8[32768]{0}', space=vmem, size = 0x8000, scoped, tag = 'input window, operand 10, single buffered']
    #allocation12 [shape = 's32[1]{0}', space=sflag, size = 0x4, scoped, tag = 'scoped memory for transformer_block.1']
    #allocation13 [shape = 'u8[32768]{0}', space=vmem, size = 0x8000, scoped, tag = 'input window, operand 11, single buffered']
    #allocation14 [shape = 'u8[8192]{0}', space=vmem, size = 0x2000, scoped, tag = 'output window, operand 0, single buffered']
    %21 = vsyncpa [#allocation3], 0
    %22 = vsyncpa [#allocation6], 0
    %23 = vsyncpa [#allocation9], 0
    %24 = vsyncpa [#allocation12], 0
    %25 = vsyncpa [#allocation4], 0
    // Predicated region
    $region2: #{transformer_block.1} parent=1 // pred_check
      _
    $region3: #{transformer_block.1} parent=1 // pred_check_branch
      %27 = sbr.rel (0) target = $region5
    $region4: #{transformer_block.1} parent=1 // pred_region
      _
    $region5: #{transformer_block.1} parent=1 // pred_fallthru
      _
    // Predicated region
    $region6: #{transformer_block.1} parent=1 // pred_check
      _
    $region7: #{transformer_block.1} parent=1 // pred_check_branch
      %29 = sbr.rel (0) target = $region9
    $region8: #{transformer_block.1} parent=1 // pred_region
      %31 = vsyncadd [#allocation3], 0
      %s32 = sshll.u32 %s1, 4
      %s33 = int_to_ptr.hbm [resolvable:$true] %s32
      %s34 = sshll.u32 [#allocation2], 4
      %s35 = int_to_ptr.vmem [resolvable:$true] %s34
      %40 = dma.hbm_to_vmem [thread:$0]  %s33, 256, %s35, [#allocation3], 128, 128, 8
    $region9: #{transformer_block.1} parent=1 // pred_fallthru
      _
    // Predicated region
    $region10: #{transformer_block.1} parent=1 // pred_check
      _
    $region11: #{transformer_block.1} parent=1 // pred_check_branch
      %42 = sbr.rel (0) target = $region13
    $region12: #{transformer_block.1} parent=1 // pred_region
      %44 = vsyncadd [#allocation6], 0
      %s45 = sshll.u32 %s2, 4
      %s46 = int_to_ptr.hbm [resolvable:$true] %s45
      %s47 = sshll.u32 [#allocation5], 4
      %s48 = int_to_ptr.vmem [resolvable:$true] %s47
      %53 = dma.hbm_to_vmem [thread:$0]  %s46, 256, %s48, [#allocation6], 128, 128, 8
    $region13: #{transformer_block.1} parent=1 // pred_fallthru
      _
    // Predicated region
    $region14: #{transformer_block.1} parent=1 // pred_check
      _
    $region15: #{transformer_block.1} parent=1 // pred_check_branch
      %55 = sbr.rel (0) target = $region17
    $region16: #{transformer_block.1} parent=1 // pred_region
      _
    $region17: #{transformer_block.1} parent=1 // pred_fallthru
      _
    // Predicated region
    $region18: #{transformer_block.1} parent=1 // pred_check
      _
    $region19: #{transformer_block.1} parent=1 // pred_check_branch
      %57 = sbr.rel (0) target = $region21
    $region20: #{transformer_block.1} parent=1 // pred_region
      _
    $region21: #{transformer_block.1} parent=1 // pred_fallthru
      _
    // Predicated region
    $region22: #{transformer_block.1} parent=1 // pred_check
      _
    $region23: #{transformer_block.1} parent=1 // pred_check_branch
      %59 = sbr.rel (0) target = $region25
    $region24: #{transformer_block.1} parent=1 // pred_region
      _
    $region25: #{transformer_block.1} parent=1 // pred_fallthru
      _
    // Predicated region
    $region26: #{transformer_block.1} parent=1 // pred_check
      _
    $region27: #{transformer_block.1} parent=1 // pred_check_branch
      %61 = sbr.rel (0) target = $region29
    $region28: #{transformer_block.1} parent=1 // pred_region
      _
    $region29: #{transformer_block.1} parent=1 // pred_fallthru
      _
    // Predicated region
    $region30: #{transformer_block.1} parent=1 // pred_check
      _
    $region31: #{transformer_block.1} parent=1 // pred_check_branch
      %63 = sbr.rel (0) target = $region33
    $region32: #{transformer_block.1} parent=1 // pred_region
      %65 = vsyncadd [#allocation6], 0
      %s66 = sshll.u32 %s7, 4
      %s67 = int_to_ptr.hbm [resolvable:$true] %s66
      %s68 = sshll.u32 [#allocation7], 4
      %s69 = int_to_ptr.vmem [resolvable:$true] %s68
      %74 = dma.hbm_to_vmem [thread:$0]  %s67, 1024, %s69, [#allocation6], 128, 128, 8
    $region33: #{transformer_block.1} parent=1 // pred_fallthru
      _
    // Predicated region
    $region34: #{transformer_block.1} parent=1 // pred_check
      _
    $region35: #{transformer_block.1} parent=1 // pred_check_branch
      %76 = sbr.rel (0) target = $region37
    $region36: #{transformer_block.1} parent=1 // pred_region
      %78 = vsyncadd [#allocation9], 0
      %s79 = sshll.u32 %s8, 4
      %s80 = int_to_ptr.hbm [resolvable:$true] %s79
      %s81 = sshll.u32 [#allocation8], 4
      %s82 = int_to_ptr.vmem [resolvable:$true] %s81
      %87 = dma.hbm_to_vmem [thread:$0]  %s80, 1024, %s82, [#allocation9], 128, 128, 8
    $region37: #{transformer_block.1} parent=1 // pred_fallthru
      _
    // Predicated region
    $region38: #{transformer_block.1} parent=1 // pred_check
      _
    $region39: #{transformer_block.1} parent=1 // pred_check_branch
      %89 = sbr.rel (0) target = $region41
    $region40: #{transformer_block.1} parent=1 // pred_region
      %91 = vsyncadd [#allocation9], 0
      %s92 = sshll.u32 %s9, 4
      %s93 = int_to_ptr.hbm [resolvable:$true] %s92
      %s94 = sshll.u32 [#allocation10], 4
      %s95 = int_to_ptr.vmem [resolvable:$true] %s94
      %100 = dma.hbm_to_vmem [thread:$0]  %s93, 1024, %s95, [#allocation9], 128, 128, 8
    $region41: #{transformer_block.1} parent=1 // pred_fallthru
      _
    // Predicated region
    $region42: #{transformer_block.1} parent=1 // pred_check
      _
    $region43: #{transformer_block.1} parent=1 // pred_check_branch
      %102 = sbr.rel (0) target = $region45
    $region44: #{transformer_block.1} parent=1 // pred_region
      %104 = vsyncadd [#allocation12], 0
      %s105 = sshll.u32 %s10, 4
      %s106 = int_to_ptr.hbm [resolvable:$true] %s105
      %s107 = sshll.u32 [#allocation11], 4
      %s108 = int_to_ptr.vmem [resolvable:$true] %s107
      %113 = dma.hbm_to_vmem [thread:$0]  %s106, 1024, %s108, [#allocation12], 128, 128, 8
    $region45: #{transformer_block.1} parent=1 // pred_fallthru
      _
    // Predicated region
    $region46: #{transformer_block.1} parent=1 // pred_check
      _
    $region47: #{transformer_block.1} parent=1 // pred_check_branch
      %115 = sbr.rel (0) target = $region49
    $region48: #{transformer_block.1} parent=1 // pred_region
      %117 = vsyncadd [#allocation12], 0
      %s118 = sshll.u32 %s11, 4
      %s119 = int_to_ptr.hbm [resolvable:$true] %s118
      %s120 = sshll.u32 [#allocation13], 4
      %s121 = int_to_ptr.vmem [resolvable:$true] %s120
      %126 = dma.hbm_to_vmem [thread:$0]  %s119, 1024, %s121, [#allocation12], 128, 128, 8
    $region49: #{transformer_block.1} parent=1 // pred_fallthru
      _
    // Predicated region
    $region50: #{transformer_block.1} parent=1 // pred_check
      _
    $region51: #{transformer_block.1} parent=1 // pred_check_branch
      %128 = sbr.rel (0) target = $region53
    $region52: #{transformer_block.1} parent=1 // pred_region
      _
    $region53: #{transformer_block.1} parent=1 // pred_fallthru
      _
    // Predicated region
    $region54: #{transformer_block.1} parent=1 // pred_check
      _
    $region55: #{transformer_block.1} parent=1 // pred_check_branch
      %130 = sbr.rel (0) target = $region57
    $region56: #{transformer_block.1} parent=1 // pred_region
      _
    $region57: #{transformer_block.1} parent=1 // pred_fallthru
      _
    // Predicated region
    $region58: #{transformer_block.1} parent=1 // pred_check
      _
    $region59: #{transformer_block.1} parent=1 // pred_check_branch
      %132 = sbr.rel (0) target = $region61
    $region60: #{transformer_block.1} parent=1 // pred_region
      _
    $region61: #{transformer_block.1} parent=1 // pred_fallthru
      _
    // Predicated region
    $region62: #{transformer_block.1} parent=1 // pred_check
      _
    $region63: #{transformer_block.1} parent=1 // pred_check_branch
      %134 = sbr.rel (0) target = $region65
    $region64: #{transformer_block.1} parent=1 // pred_region
      _
    $region65: #{transformer_block.1} parent=1 // pred_fallthru
      _
    // Predicated region
    $region66: #{transformer_block.1} parent=1 // pred_check
      _
    $region67: #{transformer_block.1} parent=1 // pred_check_branch
      %136 = sbr.rel (0) target = $region69
    $region68: #{transformer_block.1} parent=1 // pred_region
      %138 = dma.done [#allocation3], 256
    $region69: #{transformer_block.1} parent=1 // pred_fallthru
      _
    // Predicated region
    $region70: #{transformer_block.1} parent=1 // pred_check
      _
    $region71: #{transformer_block.1} parent=1 // pred_check_branch
      %140 = sbr.rel (0) target = $region73
    $region72: #{transformer_block.1} parent=1 // pred_region
      %142 = dma.done [#allocation6], 256
    $region73: #{transformer_block.1} parent=1 // pred_fallthru
      _
    // Predicated region
    $region74: #{transformer_block.1} parent=1 // pred_check
      _
    $region75: #{transformer_block.1} parent=1 // pred_check_branch
      %144 = sbr.rel (0) target = $region77
    $region76: #{transformer_block.1} parent=1 // pred_region
      %146 = dma.done [#allocation6], 1024
    $region77: #{transformer_block.1} parent=1 // pred_fallthru
      _
    // Predicated region
    $region78: #{transformer_block.1} parent=1 // pred_check
      _
    $region79: #{transformer_block.1} parent=1 // pred_check_branch
      %148 = sbr.rel (0) target = $region81
    $region80: #{transformer_block.1} parent=1 // pred_region
      %150 = dma.done [#allocation9], 1024
    $region81: #{transformer_block.1} parent=1 // pred_fallthru
      _
    // Predicated region
    $region82: #{transformer_block.1} parent=1 // pred_check
      _
    $region83: #{transformer_block.1} parent=1 // pred_check_branch
      %152 = sbr.rel (0) target = $region85
    $region84: #{transformer_block.1} parent=1 // pred_region
      %154 = dma.done [#allocation9], 1024
    $region85: #{transformer_block.1} parent=1 // pred_fallthru
      _
    // Predicated region
    $region86: #{transformer_block.1} parent=1 // pred_check
      _
    $region87: #{transformer_block.1} parent=1 // pred_check_branch
      %156 = sbr.rel (0) target = $region89
    $region88: #{transformer_block.1} parent=1 // pred_region
      %158 = dma.done [#allocation12], 1024
    $region89: #{transformer_block.1} parent=1 // pred_fallthru
      _
    // Predicated region
    $region90: #{transformer_block.1} parent=1 // pred_check
      _
    $region91: #{transformer_block.1} parent=1 // pred_check_branch
      %160 = sbr.rel (0) target = $region93
    $region92: #{transformer_block.1} parent=1 // pred_region
      %162 = dma.done [#allocation12], 1024
    $region93: #{transformer_block.1} parent=1 // pred_fallthru
      _
    %v163 = vld [vmem:[%s0] sm:$0xff]
    %v164 = vld [vmem:[%s0 + $0x8] sm:$0xff]
    %v165 = vmul.f32 %v163, %v163
    %v166 = vmul.f32 %v164, %v164
    %vm167 = vcmask 523264
    %v168 = vsel %vm167, %v165, 0.0
    %169 = vadd.xlane.f32.xlu0 %v168
    %v170 = vpop.xlane.xlu0 %169
    %v171 = vsel %vm167, %v166, 0.0
    %172 = vadd.xlane.f32.xlu0 %v171
    %v173 = vpop.xlane.xlu0 %172
    %v174 = vrcp.pop 64.0
    %v175 = vmul.f32 64.0, %v174
    %v176 = vsub.f32 1.0, %v175
    %v177 = vmul.f32 %v174, %v176
    %v178 = vadd.f32 %v174, %v177
    %vm179 = vweird.f32 %v174
    %v180 = vsel %vm179, %v174, %v178
    %v181 = vmul.f32 %v170, %v180
    %v182 = vmul.f32 %v173, %v180
    %v183 = vadd.f32 %v181, 1e-05
    %v184 = vadd.f32 %v182, 1e-05
    %v185 = vrsqrt.pop %v183
    %v186 = vmul.f32 %v185, %v183
    %v187 = vmul.f32 %v186, %v185
    %v188 = vmul.f32 0.5, %v187
    %v189 = vsub.f32 1.5, %v188
    %v190 = vmul.f32 %v185, %v189
    %vm191 = vweird.f32 %v183
    %vm192 = vweird.f32 %v185
    %vm193 = vmor %vm191, %vm192
    %v194 = vsel %vm193, %v185, %v190
    %v195 = vrsqrt.pop %v184
    %v196 = vmul.f32 %v195, %v184
    %v197 = vmul.f32 %v196, %v195
    %v198 = vmul.f32 0.5, %v197
    %v199 = vsub.f32 1.5, %v198
    %v200 = vmul.f32 %v195, %v199
    %vm201 = vweird.f32 %v184
    %vm202 = vweird.f32 %v195
    %vm203 = vmor %vm201, %vm202
    %v204 = vsel %vm203, %v195, %v200
    %v205 = vmul.f32 %v163, %v194
    %v206 = vmul.f32 %v164, %v204
    %v207 = vld [vmem:[%s14] sm:$0x1]
    %v209 = vperm.slane %v207, 0
    %v211 = vmul.f32 %v205, %v209
    %v212 = vmul.f32 %v206, %v209
    %v213 = vld [vmem:[%s6] sm:$0xff]
    %v214 = vld [vmem:[%s6 + $0x8] sm:$0xff]
    %v215 = vld [vmem:[%s6 + $0x10] sm:$0xff]
    %v216 = vld [vmem:[%s6 + $0x18] sm:$0xff]
    %v217 = vld [vmem:[%s6 + $0x20] sm:$0xff]
    %v218 = vld [vmem:[%s6 + $0x28] sm:$0xff]
    %v219 = vld [vmem:[%s6 + $0x30] sm:$0xff]
    %v220 = vld [vmem:[%s6 + $0x38] sm:$0xff]
    %v222 = vsel %vm167, %v211, 0
    %v225 = vsel %vm167, %v212, 0
    %227 = vmatpush.msra.mxu0 0.0
    %228 = vmatpush.msra.mxu0 0.0
    %229 = vmatpush.msra.mxu0 0.0
    %230 = vmatpush.msra.mxu0 0.0
    %231 = vmatpush.msra.mxu0 0.0
    %232 = vmatpush.msra.mxu0 0.0
    %233 = vmatpush.msra.mxu0 0.0
    %234 = vmatpush.msra.mxu0 0.0
    %235 = vmatpush.msra.mxu0 %v220
    %236 = vmatpush.msra.mxu0 %v219
    %237 = vmatpush.msra.mxu0 %v218
    %238 = vmatpush.msra.mxu0 %v217
    %239 = vmatpush.msra.mxu0 %v216
    %240 = vmatpush.msra.mxu0 %v215
    %241 = vmatpush.msra.mxu0 %v214
    %242 = vmatpush.msra.mxu0 %v213
    %243 = vmatmul.f32.gmra.mxu0 %v222
    %v244 = vpop.f32.mrf.mxu0
    %v245 = vadd.f32 0.0, %v244
    %246 = vmatmul.f32.gmra.mxu0 %v225
    %v247 = vpop.f32.mrf.mxu0
    %v248 = vadd.f32 0.0, %v247
    %249 = vdwg.mxu0
    %v250 = vld [vmem:[#allocation7] sm:$0xff]
    %v251 = vld [vmem:[#allocation7 + $0x8] sm:$0xff]
    %v252 = vld [vmem:[#allocation7 + $0x10] sm:$0xff]
    %v253 = vld [vmem:[#allocation7 + $0x18] sm:$0xff]
    %v254 = vld [vmem:[#allocation7 + $0x20] sm:$0xff]
    %v255 = vld [vmem:[#allocation7 + $0x28] sm:$0xff]
    %v256 = vld [vmem:[#allocation7 + $0x30] sm:$0xff]
    %v257 = vld [vmem:[#allocation7 + $0x38] sm:$0xff]
    %258 = vmatpush.msra.mxu0 0.0
    %259 = vmatpush.msra.mxu0 0.0
    %260 = vmatpush.msra.mxu0 0.0
    %261 = vmatpush.msra.mxu0 0.0
    %262 = vmatpush.msra.mxu0 0.0
    %263 = vmatpush.msra.mxu0 0.0
    %264 = vmatpush.msra.mxu0 0.0
    %265 = vmatpush.msra.mxu0 0.0
    %266 = vmatpush.msra.mxu0 %v257
    %267 = vmatpush.msra.mxu0 %v256
    %268 = vmatpush.msra.mxu0 %v255
    %269 = vmatpush.msra.mxu0 %v254
    %270 = vmatpush.msra.mxu0 %v253
    %271 = vmatpush.msra.mxu0 %v252
    %272 = vmatpush.msra.mxu0 %v251
    %273 = vmatpush.msra.mxu0 %v250
    %274 = vmatmul.f32.gmra.mxu0 %v222
    %v275 = vpop.f32.mrf.mxu0
    %v276 = vadd.f32 0.0, %v275
    %277 = vmatmul.f32.gmra.mxu0 %v225
    %v278 = vpop.f32.mrf.mxu0
    %v279 = vadd.f32 0.0, %v278
    %280 = vdwg.mxu0
    %v281 = vld [vmem:[#allocation8] sm:$0xff]
    %v282 = vld [vmem:[#allocation8 + $0x8] sm:$0xff]
    %v283 = vld [vmem:[#allocation8 + $0x10] sm:$0xff]
    %v284 = vld [vmem:[#allocation8 + $0x18] sm:$0xff]
    %v285 = vld [vmem:[#allocation8 + $0x20] sm:$0xff]
    %v286 = vld [vmem:[#allocation8 + $0x28] sm:$0xff]
    %v287 = vld [vmem:[#allocation8 + $0x30] sm:$0xff]
    %v288 = vld [vmem:[#allocation8 + $0x38] sm:$0xff]
    %289 = vmatpush.msra.mxu0 0.0
    %290 = vmatpush.msra.mxu0 0.0
    %291 = vmatpush.msra.mxu0 0.0
    %292 = vmatpush.msra.mxu0 0.0
    %293 = vmatpush.msra.mxu0 0.0
    %294 = vmatpush.msra.mxu0 0.0
    %295 = vmatpush.msra.mxu0 0.0
    %296 = vmatpush.msra.mxu0 0.0
    %297 = vmatpush.msra.mxu0 %v288
    %298 = vmatpush.msra.mxu0 %v287
    %299 = vmatpush.msra.mxu0 %v286
    %300 = vmatpush.msra.mxu0 %v285
    %301 = vmatpush.msra.mxu0 %v284
    %302 = vmatpush.msra.mxu0 %v283
    %303 = vmatpush.msra.mxu0 %v282
    %304 = vmatpush.msra.mxu0 %v281
    %305 = vmatmul.f32.gmra.mxu0 %v222
    %v306 = vpop.f32.mrf.mxu0
    %v307 = vadd.f32 0.0, %v306
    %308 = vmatmul.f32.gmra.mxu0 %v225
    %v309 = vpop.f32.mrf.mxu0
    %v310 = vadd.f32 0.0, %v309
    %311 = vdwg.mxu0
    %v312 = vld [vmem:[#allocation10] sm:$0xff]
    %v313 = vld [vmem:[#allocation10 + $0x8] sm:$0xff]
    %v314 = vld [vmem:[#allocation10 + $0x10] sm:$0xff]
    %v315 = vld [vmem:[#allocation10 + $0x18] sm:$0xff]
    %v316 = vld [vmem:[#allocation10 + $0x20] sm:$0xff]
    %v317 = vld [vmem:[#allocation10 + $0x28] sm:$0xff]
    %v318 = vld [vmem:[#allocation10 + $0x30] sm:$0xff]
    %v319 = vld [vmem:[#allocation10 + $0x38] sm:$0xff]
    %320 = vmatpush.msra.mxu0 0.0
    %321 = vmatpush.msra.mxu0 0.0
    %322 = vmatpush.msra.mxu0 0.0
    %323 = vmatpush.msra.mxu0 0.0
    %324 = vmatpush.msra.mxu0 0.0
    %325 = vmatpush.msra.mxu0 0.0
    %326 = vmatpush.msra.mxu0 0.0
    %327 = vmatpush.msra.mxu0 0.0
    %328 = vmatpush.msra.mxu0 %v319
    %329 = vmatpush.msra.mxu0 %v318
    %330 = vmatpush.msra.mxu0 %v317
    %331 = vmatpush.msra.mxu0 %v316
    %332 = vmatpush.msra.mxu0 %v315
    %333 = vmatpush.msra.mxu0 %v314
    %334 = vmatpush.msra.mxu0 %v313
    %335 = vmatpush.msra.mxu0 %v312
    %336 = vmatmul.f32.gmra.mxu0 %v222
    %v337 = vpop.f32.mrf.mxu0
    %v338 = vadd.f32 0.0, %v337
    %339 = vmatmul.f32.gmra.mxu0 %v225
    %v340 = vpop.f32.mrf.mxu0
    %v341 = vadd.f32 0.0, %v340
    %342 = vdwg.mxu0
    %v343 = vld [vmem:[#allocation11] sm:$0xff]
    %v344 = vld [vmem:[#allocation11 + $0x8] sm:$0xff]
    %v345 = vld [vmem:[#allocation11 + $0x10] sm:$0xff]
    %v346 = vld [vmem:[#allocation11 + $0x18] sm:$0xff]
    %v347 = vld [vmem:[#allocation11 + $0x20] sm:$0xff]
    %v348 = vld [vmem:[#allocation11 + $0x28] sm:$0xff]
    %v349 = vld [vmem:[#allocation11 + $0x30] sm:$0xff]
    %v350 = vld [vmem:[#allocation11 + $0x38] sm:$0xff]
    %351 = vmatpush.msra.mxu0 0.0
    %352 = vmatpush.msra.mxu0 0.0
    %353 = vmatpush.msra.mxu0 0.0
    %354 = vmatpush.msra.mxu0 0.0
    %355 = vmatpush.msra.mxu0 0.0
    %356 = vmatpush.msra.mxu0 0.0
    %357 = vmatpush.msra.mxu0 0.0
    %358 = vmatpush.msra.mxu0 0.0
    %359 = vmatpush.msra.mxu0 %v350
    %360 = vmatpush.msra.mxu0 %v349
    %361 = vmatpush.msra.mxu0 %v348
    %362 = vmatpush.msra.mxu0 %v347
    %363 = vmatpush.msra.mxu0 %v346
    %364 = vmatpush.msra.mxu0 %v345
    %365 = vmatpush.msra.mxu0 %v344
    %366 = vmatpush.msra.mxu0 %v343
    %367 = vmatmul.f32.gmra.mxu0 %v222
    %v368 = vpop.f32.mrf.mxu0
    %v369 = vadd.f32 0.0, %v368
    %370 = vmatmul.f32.gmra.mxu0 %v225
    %v371 = vpop.f32.mrf.mxu0
    %v372 = vadd.f32 0.0, %v371
    %373 = vdwg.mxu0
    %v374 = vld [vmem:[#allocation2] sm:$0xff]
    %v375 = vld [vmem:[#allocation2 + $0x8] sm:$0xff]
    %v376 = vld [vmem:[#allocation5] sm:$0xff]
    %v377 = vld [vmem:[#allocation5 + $0x8] sm:$0xff]
    %v378 = vmul.f32 %v245, %v374
    %v379 = vmul.f32 %v248, %v375
    %v380 = vmul.f32 %v276, %v376
    %v381 = vmul.f32 %v279, %v377
    %v382 = vadd.f32 %v378, %v380
    %v383 = vadd.f32 %v379, %v381
    %v384 = vmul.f32 %v307, %v374
    %v385 = vmul.f32 %v310, %v375
    %v386 = vmul.f32 %v338, %v376
    %v387 = vmul.f32 %v341, %v377
    %v388 = vadd.f32 %v384, %v386
    %v389 = vadd.f32 %v385, %v387
    %v390 = vld [vmem:[%s3] sm:$0xff]
    %v391 = vld [vmem:[%s3 + $0x8] sm:$0xff]
    %v392 = vld [vmem:[%s3 + $0x10] sm:$0xff]
    %v393 = vld [vmem:[%s3 + $0x18] sm:$0xff]
    %v394 = vld [vmem:[%s3 + $0x20] sm:$0xff]
    %v395 = vld [vmem:[%s3 + $0x28] sm:$0xff]
    %v396 = vld [vmem:[%s3 + $0x30] sm:$0xff]
    %v397 = vld [vmem:[%s3 + $0x38] sm:$0xff]
    %v398 = vmul.f32 %v382, %v390
    %v399 = vmul.f32 %v383, %v391
    %v400 = vmul.f32 %v382, %v392
    %v401 = vmul.f32 %v383, %v393
    %v402 = vmul.f32 %v382, %v394
    %v403 = vmul.f32 %v383, %v395
    %v404 = vmul.f32 %v382, %v396
    %v405 = vmul.f32 %v383, %v397
    %v406 = vld [vmem:[%s5] sm:$0xff]
    %v407 = vld [vmem:[%s5 + $0x8] sm:$0xff]
    %v408 = vld [vmem:[%s5 + $0x10] sm:$0xff]
    %v409 = vld [vmem:[%s5 + $0x18] sm:$0xff]
    %v410 = vld [vmem:[%s5 + $0x20] sm:$0xff]
    %v411 = vld [vmem:[%s5 + $0x28] sm:$0xff]
    %v412 = vld [vmem:[%s5 + $0x30] sm:$0xff]
    %v413 = vld [vmem:[%s5 + $0x38] sm:$0xff]
    %v415 = vsel %vm167, %v398, 0
    %v418 = vsel %vm167, %v399, 0
    %v421 = vsel %vm167, %v400, 0
    %v424 = vsel %vm167, %v401, 0
    %v427 = vsel %vm167, %v402, 0
    %v430 = vsel %vm167, %v403, 0
    %v433 = vsel %vm167, %v404, 0
    %v436 = vsel %vm167, %v405, 0
    %v439 = vsel %vm167, %v388, 0
    %v442 = vsel %vm167, %v389, 0
    %444 = vmatpush.xpose.msra.mxu0 0.0
    %445 = vmatpush.xpose.msra.mxu0 0.0
    %446 = vmatpush.xpose.msra.mxu0 0.0
    %447 = vmatpush.xpose.msra.mxu0 0.0
    %448 = vmatpush.xpose.msra.mxu0 0.0
    %449 = vmatpush.xpose.msra.mxu0 0.0
    %450 = vmatpush.xpose.msra.mxu0 0.0
    %451 = vmatpush.xpose.msra.mxu0 0.0
    %452 = vmatpush.xpose.msra.mxu0 0.0
    %453 = vmatpush.xpose.msra.mxu0 0.0
    %454 = vmatpush.xpose.msra.mxu0 0.0
    %455 = vmatpush.xpose.msra.mxu0 0.0
    %456 = vmatpush.xpose.msra.mxu0 0.0
    %457 = vmatpush.xpose.msra.mxu0 0.0
    %458 = vmatpush.xpose.msra.mxu0 %v442
    %459 = vmatpush.xpose.msra.mxu0 %v439
    %460 = vmatmul.f32.gmra.mxu0 %v415
    %v461 = vpop.f32.mrf.mxu0
    %v462 = vadd.f32 %v406, %v461
    %463 = vmatmul.f32.gmra.mxu0 %v418
    %v464 = vpop.f32.mrf.mxu0
    %v465 = vadd.f32 %v407, %v464
    %466 = vmatmul.f32.gmra.mxu0 %v421
    %v467 = vpop.f32.mrf.mxu0
    %v468 = vadd.f32 %v408, %v467
    %469 = vmatmul.f32.gmra.mxu0 %v424
    %v470 = vpop.f32.mrf.mxu0
    %v471 = vadd.f32 %v409, %v470
    %472 = vmatmul.f32.gmra.mxu0 %v427
    %v473 = vpop.f32.mrf.mxu0
    %v474 = vadd.f32 %v410, %v473
    %475 = vmatmul.f32.gmra.mxu0 %v430
    %v476 = vpop.f32.mrf.mxu0
    %v477 = vadd.f32 %v411, %v476
    %478 = vmatmul.f32.gmra.mxu0 %v433
    %v479 = vpop.f32.mrf.mxu0
    %v480 = vadd.f32 %v412, %v479
    %481 = vmatmul.f32.gmra.mxu0 %v436
    %v482 = vpop.f32.mrf.mxu0
    %v483 = vadd.f32 %v413, %v482
    %484 = vdwg.mxu0
    %vm485 = vcmask 130048
    %v486 = vsel %vm485, %v462, -inf
    %487 = vmax.xlane.f32.xlu0 %v486
    %v488 = vpop.xlane.xlu0 %487
    %v489 = vsel %vm485, %v465, -inf
    %490 = vmax.xlane.f32.xlu0 %v489
    %v491 = vpop.xlane.xlu0 %490
    %v492 = vsel %vm485, %v468, -inf
    %493 = vmax.xlane.f32.xlu0 %v492
    %v494 = vpop.xlane.xlu0 %493
    %v495 = vsel %vm485, %v471, -inf
    %496 = vmax.xlane.f32.xlu0 %v495
    %v497 = vpop.xlane.xlu0 %496
    %v498 = vsel %vm485, %v474, -inf
    %499 = vmax.xlane.f32.xlu0 %v498
    %v500 = vpop.xlane.xlu0 %499
    %v501 = vsel %vm485, %v477, -inf
    %502 = vmax.xlane.f32.xlu0 %v501
    %v503 = vpop.xlane.xlu0 %502
    %v504 = vsel %vm485, %v480, -inf
    %505 = vmax.xlane.f32.xlu0 %v504
    %v506 = vpop.xlane.xlu0 %505
    %v507 = vsel %vm485, %v483, -inf
    %508 = vmax.xlane.f32.xlu0 %v507
    %v509 = vpop.xlane.xlu0 %508
    %v510 = vsub.f32 %v462, %v488
    %v511 = vsub.f32 %v465, %v491
    %v512 = vsub.f32 %v468, %v494
    %v513 = vsub.f32 %v471, %v497
    %v514 = vsub.f32 %v474, %v500
    %v515 = vsub.f32 %v477, %v503
    %v516 = vsub.f32 %v480, %v506
    %v517 = vsub.f32 %v483, %v509
    %v518 = vmul.f32 %v510, 1.442695
    %v519 = vpow.pop %v518
    %v520 = vmul.f32 %v511, 1.442695
    %v521 = vpow.pop %v520
    %v522 = vmul.f32 %v512, 1.442695
    %v523 = vpow.pop %v522
    %v524 = vmul.f32 %v513, 1.442695
    %v525 = vpow.pop %v524
    %v526 = vmul.f32 %v514, 1.442695
    %v527 = vpow.pop %v526
    %v528 = vmul.f32 %v515, 1.442695
    %v529 = vpow.pop %v528
    %v530 = vmul.f32 %v516, 1.442695
    %v531 = vpow.pop %v530
    %v532 = vmul.f32 %v517, 1.442695
    %v533 = vpow.pop %v532
    %v534 = vsel %vm485, %v519, 0.0
    %535 = vadd.xlane.f32.xlu0 %v534
    %v536 = vpop.xlane.xlu0 %535
    %v537 = vsel %vm485, %v521, 0.0
    %538 = vadd.xlane.f32.xlu0 %v537
    %v539 = vpop.xlane.xlu0 %538
    %v540 = vsel %vm485, %v523, 0.0
    %541 = vadd.xlane.f32.xlu0 %v540
    %v542 = vpop.xlane.xlu0 %541
    %v543 = vsel %vm485, %v525, 0.0
    %544 = vadd.xlane.f32.xlu0 %v543
    %v545 = vpop.xlane.xlu0 %544
    %v546 = vsel %vm485, %v527, 0.0
    %547 = vadd.xlane.f32.xlu0 %v546
    %v548 = vpop.xlane.xlu0 %547
    %v549 = vsel %vm485, %v529, 0.0
    %550 = vadd.xlane.f32.xlu0 %v549
    %v551 = vpop.xlane.xlu0 %550
    %v552 = vsel %vm485, %v531, 0.0
    %553 = vadd.xlane.f32.xlu0 %v552
    %v554 = vpop.xlane.xlu0 %553
    %v555 = vsel %vm485, %v533, 0.0
    %556 = vadd.xlane.f32.xlu0 %v555
    %v557 = vpop.xlane.xlu0 %556
    %v558 = vrcp.pop %v536
    %v559 = vmul.f32 %v536, %v558
    %v560 = vsub.f32 1.0, %v559
    %v561 = vmul.f32 %v558, %v560
    %v562 = vadd.f32 %v558, %v561
    %vm563 = vweird.f32 %v536
    %vm564 = vweird.f32 %v558
    %vm565 = vmor %vm563, %vm564
    %v566 = vsel %vm565, %v558, %v562
    %v567 = vand.u32 2147483647, %v536
    %vm568 = vcmp.eq.f32.partialorder %v567, 8.507059e+37
    %v569 = vand.u32 %v536, 2147483648
    %v570 = vor.u32 1.1754944e-38, %v569
    %v571 = vsel %vm568, %v570, %v566
    %v572 = vrcp.pop %v539
    %v573 = vmul.f32 %v539, %v572
    %v574 = vsub.f32 1.0, %v573
    %v575 = vmul.f32 %v572, %v574
    %v576 = vadd.f32 %v572, %v575
    %vm577 = vweird.f32 %v539
    %vm578 = vweird.f32 %v572
    %vm579 = vmor %vm577, %vm578
    %v580 = vsel %vm579, %v572, %v576
    %v581 = vand.u32 2147483647, %v539
    %vm582 = vcmp.eq.f32.partialorder %v581, 8.507059e+37
    %v583 = vand.u32 %v539, 2147483648
    %v584 = vor.u32 1.1754944e-38, %v583
    %v585 = vsel %vm582, %v584, %v580
    %v586 = vrcp.pop %v542
    %v587 = vmul.f32 %v542, %v586
    %v588 = vsub.f32 1.0, %v587
    %v589 = vmul.f32 %v586, %v588
    %v590 = vadd.f32 %v586, %v589
    %vm591 = vweird.f32 %v542
    %vm592 = vweird.f32 %v586
    %vm593 = vmor %vm591, %vm592
    %v594 = vsel %vm593, %v586, %v590
    %v595 = vand.u32 2147483647, %v542
    %vm596 = vcmp.eq.f32.partialorder %v595, 8.507059e+37
    %v597 = vand.u32 %v542, 2147483648
    %v598 = vor.u32 1.1754944e-38, %v597
    %v599 = vsel %vm596, %v598, %v594
    %v600 = vrcp.pop %v545
    %v601 = vmul.f32 %v545, %v600
    %v602 = vsub.f32 1.0, %v601
    %v603 = vmul.f32 %v600, %v602
    %v604 = vadd.f32 %v600, %v603
    %vm605 = vweird.f32 %v545
    %vm606 = vweird.f32 %v600
    %vm607 = vmor %vm605, %vm606
    %v608 = vsel %vm607, %v600, %v604
    %v609 = vand.u32 2147483647, %v545
    %vm610 = vcmp.eq.f32.partialorder %v609, 8.507059e+37
    %v611 = vand.u32 %v545, 2147483648
    %v612 = vor.u32 1.1754944e-38, %v611
    %v613 = vsel %vm610, %v612, %v608
    %v614 = vrcp.pop %v548
    %v615 = vmul.f32 %v548, %v614
    %v616 = vsub.f32 1.0, %v615
    %v617 = vmul.f32 %v614, %v616
    %v618 = vadd.f32 %v614, %v617
    %vm619 = vweird.f32 %v548
    %vm620 = vweird.f32 %v614
    %vm621 = vmor %vm619, %vm620
    %v622 = vsel %vm621, %v614, %v618
    %v623 = vand.u32 2147483647, %v548
    %vm624 = vcmp.eq.f32.partialorder %v623, 8.507059e+37
    %v625 = vand.u32 %v548, 2147483648
    %v626 = vor.u32 1.1754944e-38, %v625
    %v627 = vsel %vm624, %v626, %v622
    %v628 = vrcp.pop %v551
    %v629 = vmul.f32 %v551, %v628
    %v630 = vsub.f32 1.0, %v629
    %v631 = vmul.f32 %v628, %v630
    %v632 = vadd.f32 %v628, %v631
    %vm633 = vweird.f32 %v551
    %vm634 = vweird.f32 %v628
    %vm635 = vmor %vm633, %vm634
    %v636 = vsel %vm635, %v628, %v632
    %v637 = vand.u32 2147483647, %v551
    %vm638 = vcmp.eq.f32.partialorder %v637, 8.507059e+37
    %v639 = vand.u32 %v551, 2147483648
    %v640 = vor.u32 1.1754944e-38, %v639
    %v641 = vsel %vm638, %v640, %v636
    %v642 = vrcp.pop %v554
    %v643 = vmul.f32 %v554, %v642
    %v644 = vsub.f32 1.0, %v643
    %v645 = vmul.f32 %v642, %v644
    %v646 = vadd.f32 %v642, %v645
    %vm647 = vweird.f32 %v554
    %vm648 = vweird.f32 %v642
    %vm649 = vmor %vm647, %vm648
    %v650 = vsel %vm649, %v642, %v646
    %v651 = vand.u32 2147483647, %v554
    %vm652 = vcmp.eq.f32.partialorder %v651, 8.507059e+37
    %v653 = vand.u32 %v554, 2147483648
    %v654 = vor.u32 1.1754944e-38, %v653
    %v655 = vsel %vm652, %v654, %v650
    %v656 = vrcp.pop %v557
    %v657 = vmul.f32 %v557, %v656
    %v658 = vsub.f32 1.0, %v657
    %v659 = vmul.f32 %v656, %v658
    %v660 = vadd.f32 %v656, %v659
    %vm661 = vweird.f32 %v557
    %vm662 = vweird.f32 %v656
    %vm663 = vmor %vm661, %vm662
    %v664 = vsel %vm663, %v656, %v660
    %v665 = vand.u32 2147483647, %v557
    %vm666 = vcmp.eq.f32.partialorder %v665, 8.507059e+37
    %v667 = vand.u32 %v557, 2147483648
    %v668 = vor.u32 1.1754944e-38, %v667
    %v669 = vsel %vm666, %v668, %v664
    %v670 = vmul.f32 %v519, %v571
    %v671 = vmul.f32 %v521, %v585
    %v672 = vmul.f32 %v523, %v599
    %v673 = vmul.f32 %v525, %v613
    %v674 = vmul.f32 %v527, %v627
    %v675 = vmul.f32 %v529, %v641
    %v676 = vmul.f32 %v531, %v655
    %v677 = vmul.f32 %v533, %v669
    %v679 = vsel %vm485, %v670, 0
    %v682 = vsel %vm485, %v671, 0
    %v685 = vsel %vm485, %v672, 0
    %v688 = vsel %vm485, %v673, 0
    %v691 = vsel %vm485, %v674, 0
    %v694 = vsel %vm485, %v675, 0
    %v697 = vsel %vm485, %v676, 0
    %v700 = vsel %vm485, %v677, 0
    %702 = vmatpush.msra.mxu0 0.0
    %703 = vmatpush.msra.mxu0 0.0
    %704 = vmatpush.msra.mxu0 0.0
    %705 = vmatpush.msra.mxu0 0.0
    %706 = vmatpush.msra.mxu0 0.0
    %707 = vmatpush.msra.mxu0 0.0
    %708 = vmatpush.msra.mxu0 0.0
    %709 = vmatpush.msra.mxu0 0.0
    %710 = vmatpush.msra.mxu0 0.0
    %711 = vmatpush.msra.mxu0 0.0
    %712 = vmatpush.msra.mxu0 0.0
    %713 = vmatpush.msra.mxu0 0.0
    %714 = vmatpush.msra.mxu0 0.0
    %715 = vmatpush.msra.mxu0 0.0
    %716 = vmatpush.msra.mxu0 %v372
    %717 = vmatpush.msra.mxu0 %v369
    %718 = vmatmul.f32.gmra.mxu0 %v679
    %v719 = vpop.f32.mrf.mxu0
    %v720 = vadd.f32 0.0, %v719
    %721 = vmatmul.f32.gmra.mxu0 %v682
    %v722 = vpop.f32.mrf.mxu0
    %v723 = vadd.f32 0.0, %v722
    %724 = vmatmul.f32.gmra.mxu0 %v685
    %v725 = vpop.f32.mrf.mxu0
    %v726 = vadd.f32 0.0, %v725
    %727 = vmatmul.f32.gmra.mxu0 %v688
    %v728 = vpop.f32.mrf.mxu0
    %v729 = vadd.f32 0.0, %v728
    %730 = vmatmul.f32.gmra.mxu0 %v691
    %v731 = vpop.f32.mrf.mxu0
    %v732 = vadd.f32 0.0, %v731
    %733 = vmatmul.f32.gmra.mxu0 %v694
    %v734 = vpop.f32.mrf.mxu0
    %v735 = vadd.f32 0.0, %v734
    %736 = vmatmul.f32.gmra.mxu0 %v697
    %v737 = vpop.f32.mrf.mxu0
    %v738 = vadd.f32 0.0, %v737
    %739 = vmatmul.f32.gmra.mxu0 %v700
    %v740 = vpop.f32.mrf.mxu0
    %v741 = vadd.f32 0.0, %v740
    %742 = vdwg.mxu0
    %v743 = vld [vmem:[%s4] sm:$0xff]
    %v744 = vld [vmem:[%s4 + $0x8] sm:$0xff]
    %v745 = vld [vmem:[%s4 + $0x10] sm:$0xff]
    %v746 = vld [vmem:[%s4 + $0x18] sm:$0xff]
    %v747 = vld [vmem:[%s4 + $0x20] sm:$0xff]
    %v748 = vld [vmem:[%s4 + $0x28] sm:$0xff]
    %v749 = vld [vmem:[%s4 + $0x30] sm:$0xff]
    %v750 = vld [vmem:[%s4 + $0x38] sm:$0xff]
    %v751 = vmul.f32 %v720, %v743
    %v752 = vmul.f32 %v723, %v744
    %v753 = vmul.f32 %v726, %v745
    %v754 = vmul.f32 %v729, %v746
    %v755 = vmul.f32 %v732, %v747
    %v756 = vmul.f32 %v735, %v748
    %v757 = vmul.f32 %v738, %v749
    %v758 = vmul.f32 %v741, %v750
    %v759 = vadd.f32 %v751, %v753
    %v760 = vadd.f32 %v752, %v754
    %v761 = vadd.f32 %v759, %v755
    %v762 = vadd.f32 %v760, %v756
    %v763 = vadd.f32 %v761, %v757
    %v764 = vadd.f32 %v762, %v758
    %v765 = vld [vmem:[#allocation13] sm:$0xff]
    %v766 = vld [vmem:[#allocation13 + $0x8] sm:$0xff]
    %v767 = vld [vmem:[#allocation13 + $0x10] sm:$0xff]
    %v768 = vld [vmem:[#allocation13 + $0x18] sm:$0xff]
    %v769 = vld [vmem:[#allocation13 + $0x20] sm:$0xff]
    %v770 = vld [vmem:[#allocation13 + $0x28] sm:$0xff]
    %v771 = vld [vmem:[#allocation13 + $0x30] sm:$0xff]
    %v772 = vld [vmem:[#allocation13 + $0x38] sm:$0xff]
    %v774 = vsel %vm167, %v763, 0
    %v777 = vsel %vm167, %v764, 0
    %779 = vmatpush.msra.mxu0 0.0
    %780 = vmatpush.msra.mxu0 0.0
    %781 = vmatpush.msra.mxu0 0.0
    %782 = vmatpush.msra.mxu0 0.0
    %783 = vmatpush.msra.mxu0 0.0
    %784 = vmatpush.msra.mxu0 0.0
    %785 = vmatpush.msra.mxu0 0.0
    %786 = vmatpush.msra.mxu0 0.0
    %787 = vmatpush.msra.mxu0 %v772
    %788 = vmatpush.msra.mxu0 %v771
    %789 = vmatpush.msra.mxu0 %v770
    %790 = vmatpush.msra.mxu0 %v769
    %791 = vmatpush.msra.mxu0 %v768
    %792 = vmatpush.msra.mxu0 %v767
    %793 = vmatpush.msra.mxu0 %v766
    %794 = vmatpush.msra.mxu0 %v765
    %795 = vmatmul.f32.gmra.mxu0 %v774
    %v796 = vpop.f32.mrf.mxu0
    %v797 = vadd.f32 0.0, %v796
    %798 = vmatmul.f32.gmra.mxu0 %v777
    %v799 = vpop.f32.mrf.mxu0
    %v800 = vadd.f32 0.0, %v799
    %801 = vdwg.mxu0
    %v802 = vadd.f32 %v163, %v797
    %v803 = vadd.f32 %v164, %v800
    %v804 = vmul.f32 %v802, %v802
    %v805 = vmul.f32 %v803, %v803
    %v806 = vsel %vm167, %v804, 0.0
    %807 = vadd.xlane.f32.xlu0 %v806
    %v808 = vpop.xlane.xlu0 %807
    %v809 = vsel %vm167, %v805, 0.0
    %810 = vadd.xlane.f32.xlu0 %v809
    %v811 = vpop.xlane.xlu0 %810
    %v812 = vmul.f32 %v808, %v180
    %v813 = vmul.f32 %v811, %v180
    %v814 = vadd.f32 %v812, 1e-05
    %v815 = vadd.f32 %v813, 1e-05
    %v816 = vrsqrt.pop %v814
    %v817 = vmul.f32 %v816, %v814
    %v818 = vmul.f32 %v817, %v816
    %v819 = vmul.f32 0.5, %v818
    %v820 = vsub.f32 1.5, %v819
    %v821 = vmul.f32 %v816, %v820
    %vm822 = vweird.f32 %v814
    %vm823 = vweird.f32 %v816
    %vm824 = vmor %vm822, %vm823
    %v825 = vsel %vm824, %v816, %v821
    %v826 = vrsqrt.pop %v815
    %v827 = vmul.f32 %v826, %v815
    %v828 = vmul.f32 %v827, %v826
    %v829 = vmul.f32 0.5, %v828
    %v830 = vsub.f32 1.5, %v829
    %v831 = vmul.f32 %v826, %v830
    %vm832 = vweird.f32 %v815
    %vm833 = vweird.f32 %v826
    %vm834 = vmor %vm832, %vm833
    %v835 = vsel %vm834, %v826, %v831
    %v836 = vmul.f32 %v802, %v825
    %v837 = vmul.f32 %v803, %v835
    %v838 = vld [vmem:[%s15] sm:$0x1]
    %v840 = vperm.slane %v838, 0
    %v842 = vmul.f32 %v836, %v840
    %v843 = vmul.f32 %v837, %v840
    %v844 = vld [vmem:[%s12] sm:$0xff]
    %v845 = vld [vmem:[%s12 + $0x8] sm:$0xff]
    %v846 = vld [vmem:[%s12 + $0x10] sm:$0xff]
    %v847 = vld [vmem:[%s12 + $0x18] sm:$0xff]
    %v848 = vld [vmem:[%s12 + $0x20] sm:$0xff]
    %v849 = vld [vmem:[%s12 + $0x28] sm:$0xff]
    %v850 = vld [vmem:[%s12 + $0x30] sm:$0xff]
    %v851 = vld [vmem:[%s12 + $0x38] sm:$0xff]
    %v852 = vld [vmem:[%s12 + $0x40] sm:$0xff]
    %v853 = vld [vmem:[%s12 + $0x48] sm:$0xff]
    %v854 = vld [vmem:[%s12 + $0x50] sm:$0xff]
    %v855 = vld [vmem:[%s12 + $0x58] sm:$0xff]
    %v856 = vld [vmem:[%s12 + $0x60] sm:$0xff]
    %v857 = vld [vmem:[%s12 + $0x68] sm:$0xff]
    %v858 = vld [vmem:[%s12 + $0x70] sm:$0xff]
    %v859 = vld [vmem:[%s12 + $0x78] sm:$0xff]
    %v860 = vld [vmem:[%s12 + $0x80] sm:$0xff]
    %v861 = vld [vmem:[%s12 + $0x88] sm:$0xff]
    %v862 = vld [vmem:[%s12 + $0x90] sm:$0xff]
    %v863 = vld [vmem:[%s12 + $0x98] sm:$0xff]
    %v864 = vld [vmem:[%s12 + $0xa0] sm:$0xff]
    %v865 = vld [vmem:[%s12 + $0xa8] sm:$0xff]
    %v866 = vld [vmem:[%s12 + $0xb0] sm:$0xff]
    %v867 = vld [vmem:[%s12 + $0xb8] sm:$0xff]
    %v868 = vld [vmem:[%s12 + $0xc0] sm:$0xff]
    %v869 = vld [vmem:[%s12 + $0xc8] sm:$0xff]
    %v870 = vld [vmem:[%s12 + $0xd0] sm:$0xff]
    %v871 = vld [vmem:[%s12 + $0xd8] sm:$0xff]
    %v872 = vld [vmem:[%s12 + $0xe0] sm:$0xff]
    %v873 = vld [vmem:[%s12 + $0xe8] sm:$0xff]
    %v874 = vld [vmem:[%s12 + $0xf0] sm:$0xff]
    %v875 = vld [vmem:[%s12 + $0xf8] sm:$0xff]
    %v877 = vsel %vm167, %v842, 0
    %v880 = vsel %vm167, %v843, 0
    %882 = vmatpush.msra.mxu0 0.0
    %883 = vmatpush.msra.mxu0 0.0
    %884 = vmatpush.msra.mxu0 0.0
    %885 = vmatpush.msra.mxu0 0.0
    %886 = vmatpush.msra.mxu0 0.0
    %887 = vmatpush.msra.mxu0 0.0
    %888 = vmatpush.msra.mxu0 0.0
    %889 = vmatpush.msra.mxu0 0.0
    %890 = vmatpush.msra.mxu0 %v872
    %891 = vmatpush.msra.mxu0 %v868
    %892 = vmatpush.msra.mxu0 %v864
    %893 = vmatpush.msra.mxu0 %v860
    %894 = vmatpush.msra.mxu0 %v856
    %895 = vmatpush.msra.mxu0 %v852
    %896 = vmatpush.msra.mxu0 %v848
    %897 = vmatpush.msra.mxu0 %v844
    %898 = vmatmul.f32.gmra.mxu0 %v877
    %v899 = vpop.f32.mrf.mxu0
    %v900 = vadd.f32 0.0, %v899
    %901 = vmatmul.f32.gmra.mxu0 %v880
    %v902 = vpop.f32.mrf.mxu0
    %v903 = vadd.f32 0.0, %v902
    %904 = vdwg.mxu0
    %905 = vmatpush.msra.mxu0 0.0
    %906 = vmatpush.msra.mxu0 0.0
    %907 = vmatpush.msra.mxu0 0.0
    %908 = vmatpush.msra.mxu0 0.0
    %909 = vmatpush.msra.mxu0 0.0
    %910 = vmatpush.msra.mxu0 0.0
    %911 = vmatpush.msra.mxu0 0.0
    %912 = vmatpush.msra.mxu0 0.0
    %913 = vmatpush.msra.mxu0 %v873
    %914 = vmatpush.msra.mxu0 %v869
    %915 = vmatpush.msra.mxu0 %v865
    %916 = vmatpush.msra.mxu0 %v861
    %917 = vmatpush.msra.mxu0 %v857
    %918 = vmatpush.msra.mxu0 %v853
    %919 = vmatpush.msra.mxu0 %v849
    %920 = vmatpush.msra.mxu0 %v845
    %921 = vmatmul.f32.gmra.mxu0 %v877
    %v922 = vpop.f32.mrf.mxu0
    %v923 = vadd.f32 0.0, %v922
    %924 = vmatmul.f32.gmra.mxu0 %v880
    %v925 = vpop.f32.mrf.mxu0
    %v926 = vadd.f32 0.0, %v925
    %927 = vdwg.mxu0
    %928 = vmatpush.msra.mxu0 0.0
    %929 = vmatpush.msra.mxu0 0.0
    %930 = vmatpush.msra.mxu0 0.0
    %931 = vmatpush.msra.mxu0 0.0
    %932 = vmatpush.msra.mxu0 0.0
    %933 = vmatpush.msra.mxu0 0.0
    %934 = vmatpush.msra.mxu0 0.0
    %935 = vmatpush.msra.mxu0 0.0
    %936 = vmatpush.msra.mxu0 %v874
    %937 = vmatpush.msra.mxu0 %v870
    %938 = vmatpush.msra.mxu0 %v866
    %939 = vmatpush.msra.mxu0 %v862
    %940 = vmatpush.msra.mxu0 %v858
    %941 = vmatpush.msra.mxu0 %v854
    %942 = vmatpush.msra.mxu0 %v850
    %943 = vmatpush.msra.mxu0 %v846
    %944 = vmatmul.f32.gmra.mxu0 %v877
    %v945 = vpop.f32.mrf.mxu0
    %v946 = vadd.f32 0.0, %v945
    %947 = vmatmul.f32.gmra.mxu0 %v880
    %v948 = vpop.f32.mrf.mxu0
    %v949 = vadd.f32 0.0, %v948
    %950 = vdwg.mxu0
    %951 = vmatpush.msra.mxu0 0.0
    %952 = vmatpush.msra.mxu0 0.0
    %953 = vmatpush.msra.mxu0 0.0
    %954 = vmatpush.msra.mxu0 0.0
    %955 = vmatpush.msra.mxu0 0.0
    %956 = vmatpush.msra.mxu0 0.0
    %957 = vmatpush.msra.mxu0 0.0
    %958 = vmatpush.msra.mxu0 0.0
    %959 = vmatpush.msra.mxu0 %v875
    %960 = vmatpush.msra.mxu0 %v871
    %961 = vmatpush.msra.mxu0 %v867
    %962 = vmatpush.msra.mxu0 %v863
    %963 = vmatpush.msra.mxu0 %v859
    %964 = vmatpush.msra.mxu0 %v855
    %965 = vmatpush.msra.mxu0 %v851
    %966 = vmatpush.msra.mxu0 %v847
    %967 = vmatmul.f32.gmra.mxu0 %v877
    %v968 = vpop.f32.mrf.mxu0
    %v969 = vadd.f32 0.0, %v968
    %970 = vmatmul.f32.gmra.mxu0 %v880
    %v971 = vpop.f32.mrf.mxu0
    %v972 = vadd.f32 0.0, %v971
    %973 = vdwg.mxu0
    %v974 = vxor.u32 %v900, 2147483648
    %v975 = vxor.u32 %v923, 2147483648
    %v976 = vxor.u32 %v903, 2147483648
    %v977 = vxor.u32 %v926, 2147483648
    %v978 = vmul.f32 %v974, 1.442695
    %v979 = vpow.pop %v978
    %v980 = vmul.f32 %v975, 1.442695
    %v981 = vpow.pop %v980
    %v982 = vmul.f32 %v976, 1.442695
    %v983 = vpow.pop %v982
    %v984 = vmul.f32 %v977, 1.442695
    %v985 = vpow.pop %v984
    %v986 = vadd.f32 %v979, 1.0
    %v987 = vadd.f32 %v981, 1.0
    %v988 = vadd.f32 %v983, 1.0
    %v989 = vadd.f32 %v985, 1.0
    %v990 = vrcp.pop %v986
    %v991 = vmul.f32 %v986, %v990
    %v992 = vsub.f32 1.0, %v991
    %v993 = vmul.f32 %v990, %v992
    %v994 = vadd.f32 %v990, %v993
    %vm995 = vweird.f32 %v986
    %vm996 = vweird.f32 %v990
    %vm997 = vmor %vm995, %vm996
    %v998 = vsel %vm997, %v990, %v994
    %v999 = vand.u32 2147483647, %v986
    %vm1000 = vcmp.eq.f32.partialorder %v999, 8.507059e+37
    %v1001 = vand.u32 %v986, 2147483648
    %v1002 = vor.u32 1.1754944e-38, %v1001
    %v1003 = vsel %vm1000, %v1002, %v998
    %v1004 = vmul.f32 1.0, %v1003
    %v1005 = vrcp.pop %v987
    %v1006 = vmul.f32 %v987, %v1005
    %v1007 = vsub.f32 1.0, %v1006
    %v1008 = vmul.f32 %v1005, %v1007
    %v1009 = vadd.f32 %v1005, %v1008
    %vm1010 = vweird.f32 %v987
    %vm1011 = vweird.f32 %v1005
    %vm1012 = vmor %vm1010, %vm1011
    %v1013 = vsel %vm1012, %v1005, %v1009
    %v1014 = vand.u32 2147483647, %v987
    %vm1015 = vcmp.eq.f32.partialorder %v1014, 8.507059e+37
    %v1016 = vand.u32 %v987, 2147483648
    %v1017 = vor.u32 1.1754944e-38, %v1016
    %v1018 = vsel %vm1015, %v1017, %v1013
    %v1019 = vmul.f32 1.0, %v1018
    %v1020 = vrcp.pop %v988
    %v1021 = vmul.f32 %v988, %v1020
    %v1022 = vsub.f32 1.0, %v1021
    %v1023 = vmul.f32 %v1020, %v1022
    %v1024 = vadd.f32 %v1020, %v1023
    %vm1025 = vweird.f32 %v988
    %vm1026 = vweird.f32 %v1020
    %vm1027 = vmor %vm1025, %vm1026
    %v1028 = vsel %vm1027, %v1020, %v1024
    %v1029 = vand.u32 2147483647, %v988
    %vm1030 = vcmp.eq.f32.partialorder %v1029, 8.507059e+37
    %v1031 = vand.u32 %v988, 2147483648
    %v1032 = vor.u32 1.1754944e-38, %v1031
    %v1033 = vsel %vm1030, %v1032, %v1028
    %v1034 = vmul.f32 1.0, %v1033
    %v1035 = vrcp.pop %v989
    %v1036 = vmul.f32 %v989, %v1035
    %v1037 = vsub.f32 1.0, %v1036
    %v1038 = vmul.f32 %v1035, %v1037
    %v1039 = vadd.f32 %v1035, %v1038
    %vm1040 = vweird.f32 %v989
    %vm1041 = vweird.f32 %v1035
    %vm1042 = vmor %vm1040, %vm1041
    %v1043 = vsel %vm1042, %v1035, %v1039
    %v1044 = vand.u32 2147483647, %v989
    %vm1045 = vcmp.eq.f32.partialorder %v1044, 8.507059e+37
    %v1046 = vand.u32 %v989, 2147483648
    %v1047 = vor.u32 1.1754944e-38, %v1046
    %v1048 = vsel %vm1045, %v1047, %v1043
    %v1049 = vmul.f32 1.0, %v1048
    %v1050 = vmul.f32 %v900, %v1004
    %v1051 = vmul.f32 %v923, %v1019
    %v1052 = vmul.f32 %v903, %v1034
    %v1053 = vmul.f32 %v926, %v1049
    %v1054 = vmul.f32 %v1050, %v946
    %v1055 = vmul.f32 %v1051, %v969
    %v1056 = vmul.f32 %v1052, %v949
    %v1057 = vmul.f32 %v1053, %v972
    %v1058 = vld [vmem:[%s13] sm:$0xff]
    %v1059 = vld [vmem:[%s13 + $0x8] sm:$0xff]
    %v1060 = vld [vmem:[%s13 + $0x10] sm:$0xff]
    %v1061 = vld [vmem:[%s13 + $0x18] sm:$0xff]
    %v1062 = vld [vmem:[%s13 + $0x20] sm:$0xff]
    %v1063 = vld [vmem:[%s13 + $0x28] sm:$0xff]
    %v1064 = vld [vmem:[%s13 + $0x30] sm:$0xff]
    %v1065 = vld [vmem:[%s13 + $0x38] sm:$0xff]
    %v1066 = vld [vmem:[%s13 + $0x40] sm:$0xff]
    %v1067 = vld [vmem:[%s13 + $0x48] sm:$0xff]
    %v1068 = vld [vmem:[%s13 + $0x50] sm:$0xff]
    %v1069 = vld [vmem:[%s13 + $0x58] sm:$0xff]
    %v1070 = vld [vmem:[%s13 + $0x60] sm:$0xff]
    %v1071 = vld [vmem:[%s13 + $0x68] sm:$0xff]
    %v1072 = vld [vmem:[%s13 + $0x70] sm:$0xff]
    %v1073 = vld [vmem:[%s13 + $0x78] sm:$0xff]
    %v1074 = vld [vmem:[%s13 + $0x80] sm:$0xff]
    %v1075 = vld [vmem:[%s13 + $0x88] sm:$0xff]
    %v1076 = vld [vmem:[%s13 + $0x90] sm:$0xff]
    %v1077 = vld [vmem:[%s13 + $0x98] sm:$0xff]
    %v1078 = vld [vmem:[%s13 + $0xa0] sm:$0xff]
    %v1079 = vld [vmem:[%s13 + $0xa8] sm:$0xff]
    %v1080 = vld [vmem:[%s13 + $0xb0] sm:$0xff]
    %v1081 = vld [vmem:[%s13 + $0xb8] sm:$0xff]
    %v1082 = vld [vmem:[%s13 + $0xc0] sm:$0xff]
    %v1083 = vld [vmem:[%s13 + $0xc8] sm:$0xff]
    %v1084 = vld [vmem:[%s13 + $0xd0] sm:$0xff]
    %v1085 = vld [vmem:[%s13 + $0xd8] sm:$0xff]
    %v1086 = vld [vmem:[%s13 + $0xe0] sm:$0xff]
    %v1087 = vld [vmem:[%s13 + $0xe8] sm:$0xff]
    %v1088 = vld [vmem:[%s13 + $0xf0] sm:$0xff]
    %v1089 = vld [vmem:[%s13 + $0xf8] sm:$0xff]
    %1090 = vmatpush.msra.mxu0 %v1073
    %1091 = vmatpush.msra.mxu0 %v1072
    %1092 = vmatpush.msra.mxu0 %v1071
    %1093 = vmatpush.msra.mxu0 %v1070
    %1094 = vmatpush.msra.mxu0 %v1069
    %1095 = vmatpush.msra.mxu0 %v1068
    %1096 = vmatpush.msra.mxu0 %v1067
    %1097 = vmatpush.msra.mxu0 %v1066
    %1098 = vmatpush.msra.mxu0 %v1065
    %1099 = vmatpush.msra.mxu0 %v1064
    %1100 = vmatpush.msra.mxu0 %v1063
    %1101 = vmatpush.msra.mxu0 %v1062
    %1102 = vmatpush.msra.mxu0 %v1061
    %1103 = vmatpush.msra.mxu0 %v1060
    %1104 = vmatpush.msra.mxu0 %v1059
    %1105 = vmatpush.msra.mxu0 %v1058
    %1106 = vmatmul.f32.gmra.mxu0 %v1054
    %v1107 = vpop.f32.mrf.mxu0
    %v1108 = vadd.f32 0.0, %v1107
    %1109 = vmatmul.f32.gmra.mxu0 %v1056
    %v1110 = vpop.f32.mrf.mxu0
    %v1111 = vadd.f32 0.0, %v1110
    %1112 = vdwg.mxu0
    %1113 = vmatpush.msra.mxu0 %v1089
    %1114 = vmatpush.msra.mxu0 %v1088
    %1115 = vmatpush.msra.mxu0 %v1087
    %1116 = vmatpush.msra.mxu0 %v1086
    %1117 = vmatpush.msra.mxu0 %v1085
    %1118 = vmatpush.msra.mxu0 %v1084
    %1119 = vmatpush.msra.mxu0 %v1083
    %1120 = vmatpush.msra.mxu0 %v1082
    %1121 = vmatpush.msra.mxu0 %v1081
    %1122 = vmatpush.msra.mxu0 %v1080
    %1123 = vmatpush.msra.mxu0 %v1079
    %1124 = vmatpush.msra.mxu0 %v1078
    %1125 = vmatpush.msra.mxu0 %v1077
    %1126 = vmatpush.msra.mxu0 %v1076
    %1127 = vmatpush.msra.mxu0 %v1075
    %1128 = vmatpush.msra.mxu0 %v1074
    %1129 = vmatmul.f32.gmra.mxu0 %v1055
    %v1130 = vpop.f32.mrf.mxu0
    %v1131 = vadd.f32 %v1108, %v1130
    %1132 = vmatmul.f32.gmra.mxu0 %v1057
    %v1133 = vpop.f32.mrf.mxu0
    %v1134 = vadd.f32 %v1111, %v1133
    %1135 = vdwg.mxu0
    %v1136 = vadd.f32 %v802, %v1131
    %v1137 = vadd.f32 %v803, %v1134
    %1138 = vst.msk [vmem:[#allocation14] sm:$0xff] %vm167, %v1136
    %1139 = vst.msk [vmem:[#allocation14 + $0x8] sm:$0xff] %vm167, %v1137
    // Predicated region
    $region94: #{transformer_block.1} parent=1 // pred_check
      _
    $region95: #{transformer_block.1} parent=1 // pred_check_branch
      %1141 = sbr.rel (0) target = $region97
    $region96: #{transformer_block.1} parent=1 // pred_region
      %1143 = vsyncadd [#allocation4], 0
      %s1144 = sshll.u32 [#allocation14], 4
      %s1145 = int_to_ptr.vmem [resolvable:$true] %s1144
      %s1146 = sshll.u32 %s16, 4
      %s1147 = int_to_ptr.hbm [resolvable:$true] %s1146
      %1152 = dma.vmem_to_hbm [thread:$0]  %s1145, 256, %s1147, [#allocation4], 128, 128, 8
    $region97: #{transformer_block.1} parent=1 // pred_fallthru
      _
    // Predicated region
    $region98: #{transformer_block.1} parent=1 // pred_check
      _
    $region99: #{transformer_block.1} parent=1 // pred_check_branch
      %1154 = sbr.rel (0) target = $region101
    $region100: #{transformer_block.1} parent=1 // pred_region
      %1156 = dma.done [#allocation4], 256
    $region101: #{transformer_block.1} parent=1 // pred_fallthru
      _
    %1157 = vsyncpa [#allocation3], 1
    %1158 = vsyncpa [#allocation6], 1
    %1159 = vsyncpa [#allocation9], 1
    %1160 = vsyncpa [#allocation12], 1
    %1161 = vsyncpa [#allocation4], 1

</llo_original>
